<compile_context>
chip_gen: v7x
topology: tpu7x:2x2x1
jax: 0.10.0
libtpu: 0.0.40
codegen_flags: <defaults>
</compile_context>

<pallas_src>
import functools
import numpy as np
import jax
import jax.numpy as jnp
from jax import lax
from jax.experimental import pallas as pl
from jax.experimental.pallas import tpu as pltpu

BN_EPS = 1e-5


# ----------------------------------------------------------------------------
# BatchNorm folding / weight packing helpers (channel-major GEMM orientation)
# ----------------------------------------------------------------------------
def _fold_bn(p):
    # Fresh eval-mode BatchNorm: running_mean = 0, running_var = 1.
    w, g, b = p
    s = g / jnp.sqrt(1.0 + BN_EPS)
    return w * s[:, None, None, None], b[:, None].astype(jnp.float32)


def fold_1x1(p):
    """1x1 conv -> (Cout, Cin) f32 weight + (Cout, 1) f32 bias."""
    w, b = _fold_bn(p)
    return w[:, :, 0, 0], b


def fold_3x3(p):
    """3x3 conv -> (Cout, 9*Cin) im2col weight, tap-major / channel-minor."""
    w, b = _fold_bn(p)
    cout, cin = w.shape[0], w.shape[1]
    return jnp.transpose(w, (0, 2, 3, 1)).reshape(cout, 9 * cin), b


def fold_dw(p):
    """Depthwise 3x3 -> (9, C, 1) per-tap f32 weights + (C, 1) f32 bias."""
    w, b = _fold_bn(p)                                   # (C, 1, 3, 3)
    cch = w.shape[0]
    w9 = jnp.transpose(w[:, 0], (1, 2, 0)).reshape(9, cch)
    return w9[:, :, None].astype(jnp.float32), b


def _tap_masks(H, W):
    """mask[k, 0, col] = 1 iff tap k of the 3x3 stencil at output token `col`
    reads an in-bounds pixel (replaces explicit zero padding)."""
    ys, xs = np.meshgrid(np.arange(H), np.arange(W), indexing="ij")
    m = np.zeros((9, 1, H * W), np.float32)
    for k in range(9):
        dy, dx = k // 3 - 1, k % 3 - 1
        ok = (ys + dy >= 0) & (ys + dy < H) & (xs + dx >= 0) & (xs + dx < W)
        m[k, 0] = ok.reshape(-1).astype(np.float32)
    return jnp.asarray(m)


# ----------------------------------------------------------------------------
# The fused kernel: whole FAMNet forward for one image per grid step
# ----------------------------------------------------------------------------
def _famnet_kernel(x_ref, mask_ref,
                   wA_ref, bA_ref, wB_ref, bB_ref,
                   wdw_ref, bdw_ref, wh2_ref, bh2_ref,
                   wm2_ref, bm2_ref, wt1_ref, bt1_ref,
                   wt2_ref, bt2_ref, wfin_ref, bfin_ref,
                   o_ref, *, H, W, c, dh):
    HW = H * W
    x = x_ref[0]                                         # (c1, HW) f32

    def silu(y):                                         # EUP exp + EUP approx rcp
        return y * pl.reciprocal(1.0 + jnp.exp(-y), approx=True)

    def shift_tok(a, k):
        """Token-axis shift so column `col` holds the tap-k neighbour;
        wrapped (out-of-image) positions are zeroed by the precomputed mask."""
        dy, dx = k // 3 - 1, k % 3 - 1
        off = dy * W + dx
        if off == 0:
            return a
        # out[:, col] = a[:, (col + off) % HW], then mask the wrap-around.
        return jnp.roll(a, -off, axis=1) * mask_ref[k]

    def taps_of(a):                                      # (Cin, HW) -> (9*Cin, HW) bf16
        return jnp.concatenate([shift_tok(a, k) for k in range(9)],
                               axis=0).astype(jnp.bfloat16)

    def gemm(w_ref, act_bf16, b_ref):                    # bf16 MXU dot, f32 acc + SiLU
        return silu(jnp.dot(w_ref[...], act_bf16,
                            preferred_element_type=jnp.float32) + b_ref[...])

    # --- stage A: cv_first_1 (3x3) + cv_first_2 (1x1) in one packed K=9*c1 dot.
    #     Rows 0:c of the result are y_f1, rows c:2c are y_f2, i.e. the result
    #     IS the channel concat cat([y_f1, y_f2]) consumed by stage B.
    y_cat = gemm(wA_ref, taps_of(x), bA_ref)             # (2c, HW) f32
    y_f1, y_f2 = y_cat[:c], y_cat[c:]

    # --- stage B: cv_block_1 + cv_block_2[0] + m.cv1 packed into one dot.
    zB = gemm(wB_ref, y_cat.astype(jnp.bfloat16), bB_ref)  # (2c+dh, HW) f32
    y0, h, m_mid = zB[:c], zB[c:c + dh], zB[c + dh:]

    # --- m bottleneck second 1x1 (shortcut=False -> no residual add).
    m1 = gemm(wm2_ref, m_mid.astype(jnp.bfloat16), bm2_ref)

    # --- depthwise 3x3 on h (VPU, f32 MACs) -> cv_block_2[2].
    acc = wdw_ref[4] * h                                 # center tap
    for k in range(9):
        if k != 4:
            acc = acc + wdw_ref[k] * shift_tok(h, k)
    dw = silu(acc + bdw_ref[...])
    y1 = gemm(wh2_ref, dw.astype(jnp.bfloat16), bh2_ref)

    # --- t bottleneck: 3x3 (im2col K=9c dot) then 1x1, on y_f2.
    t_mid = gemm(wt1_ref, taps_of(y_f2), bt1_ref)
    t1 = gemm(wt2_ref, t_mid.astype(jnp.bfloat16), bt2_ref)

    # --- cv_final on the 6-way channel concat: one K=6c dot, lane-dense store.
    cat = jnp.concatenate([y0, y1, y_f1, m1, y_f2, t1],
                          axis=0).astype(jnp.bfloat16)   # (6c, HW)
    o_ref[0] = gemm(wfin_ref, cat, bfin_ref).astype(o_ref.dtype)


# ----------------------------------------------------------------------------
# FAMNet forward (Pallas)
# ----------------------------------------------------------------------------
def famnet_pallas(x_nchw, P):
    N, c1, H, W = x_nchw.shape
    HW = H * W
    c = P["cv_first_1"][0].shape[0]
    dh = P["cv_block_2_0"][0].shape[0]
    c2 = P["cv_final"][0].shape[0]

    # ---- fold BN + pack weights --------------------------------------------
    w3f1, b_f1 = fold_3x3(P["cv_first_1"])               # (c, 9*c1)
    w1f2, b_f2 = fold_1x1(P["cv_first_2"])               # (c, c1)
    # cv_first_2 folded into the center-tap (k=4) columns of the im2col weight.
    wA = jnp.concatenate(
        [w3f1, jnp.pad(w1f2, ((0, 0), (4 * c1, 4 * c1)))], axis=0)   # (2c, 9c1)
    bA = jnp.concatenate([b_f1, b_f2], axis=0)

    w_b1, b_b1 = fold_1x1(P["cv_block_1"])               # (c, 2c)
    w_h0, b_h0 = fold_1x1(P["cv_block_2_0"])             # (dh, 2c)
    w_m1, b_m1 = fold_1x1(P["m0_cv1"])                   # (c, c) -> pad K to 2c
    wB = jnp.concatenate([w_b1, w_h0, jnp.pad(w_m1, ((0, 0), (0, c)))], axis=0)
    bB = jnp.concatenate([b_b1, b_h0, b_m1], axis=0)     # (2c+dh, 1)

    w_dw, b_dw = fold_dw(P["cv_block_2_1"])              # (9, dh, 1)
    w_h2, b_h2 = fold_1x1(P["cv_block_2_2"])             # (c, dh)
    w_m2, b_m2 = fold_1x1(P["m0_cv2"])                   # (c, c)
    w_t1, b_t1 = fold_3x3(P["t0_cv1"])                   # (c, 9c)
    w_t2, b_t2 = fold_1x1(P["t0_cv2"])                   # (c, c)
    w_fin, b_fin = fold_1x1(P["cv_final"])               # (c2, 6c)

    bf = lambda w: w.astype(jnp.bfloat16)
    masks = _tap_masks(H, W)                             # (9, 1, HW) f32

    # Channel-major, tokens on the lane axis (NCHW already gives this for free).
    x = x_nchw.reshape(N, c1, HW).astype(jnp.float32)

    consts = (masks, bf(wA), bA, bf(wB), bB, w_dw, b_dw, bf(w_h2), b_h2,
              bf(w_m2), b_m2, bf(w_t1), b_t1, bf(w_t2), b_t2, bf(w_fin), b_fin)

    def const_spec(a):
        if a.ndim == 2:
            return pl.BlockSpec(a.shape, lambda n: (0, 0))
        return pl.BlockSpec(a.shape, lambda n: (0, 0, 0))

    kern = functools.partial(_famnet_kernel, H=H, W=W, c=c, dh=dh)

    # TODO(synk): for large feature maps or batch < 2*num_cores, split the
    # token axis across the grid with a 2-row recomputed halo so v7x's two
    # TensorCores each get >=2 pipelined steps and tiles stay well under the
    # 64 MiB VMEM; at these sizes one image per grid step fits trivially.
    out = pl.pallas_call(
        kern,
        out_shape=jax.ShapeDtypeStruct((N, c2, HW), jnp.float32),
        grid_spec=pltpu.PrefetchScalarGridSpec(
            num_scalar_prefetch=0,
            grid=(N,),
            in_specs=[pl.BlockSpec((1, c1, HW), lambda n: (n, 0, 0))]
                     + [const_spec(a) for a in consts],
            out_specs=pl.BlockSpec((1, c2, HW), lambda n: (n, 0, 0)),
        ),
        compiler_params=pltpu.CompilerParams(dimension_semantics=("parallel",)),
    )(x, *consts)
    return out.reshape(N, c2, H, W)                      # NCHW


# ----------------------------------------------------------------------------
# Pure-JAX reference (lax.conv, f32) for verification
# ----------------------------------------------------------------------------
def famnet_ref(x, P):
    def cbs(x, p, groups=1):
        w, g, b = p
        k = w.shape[2]
        pad = k // 2
        y = lax.conv_general_dilated(
            x, w, (1, 1), ((pad, pad), (pad, pad)),
            feature_group_count=groups,
            dimension_numbers=("NCHW", "OIHW", "NCHW"),
            precision=lax.Precision.HIGHEST)
        s = g / jnp.sqrt(1.0 + BN_EPS)
        y = y * s[None, :, None, None] + b[None, :, None, None]
        return y * (1.0 / (1.0 + jnp.exp(-y)))

    y_f1 = cbs(x, P["cv_first_1"])
    y_f2 = cbs(x, P["cv_first_2"])
    y = jnp.concatenate([y_f1, y_f2], axis=1)
    y0 = cbs(y, P["cv_block_1"])
    h = cbs(y, P["cv_block_2_0"])
    h = cbs(h, P["cv_block_2_1"], groups=h.shape[1])
    y1 = cbs(h, P["cv_block_2_2"])
    m1 = cbs(cbs(y_f1, P["m0_cv1"]), P["m0_cv2"])
    t1 = cbs(cbs(y_f2, P["t0_cv1"]), P["t0_cv2"])
    cat = jnp.concatenate([y0, y1, y_f1, m1, y_f2, t1], axis=1)
    return cbs(cat, P["cv_final"])


# ----------------------------------------------------------------------------
# Deterministic parameter init (shapes follow FAMNet.__init__, n=1)
# ----------------------------------------------------------------------------
def init_params(key, c1, c2, n=1, p_ratio=1, e=0.5):
    c = int(c2 * e)
    dim_hid = int(p_ratio * 2 * c)
    layers = [
        ("cv_first_1", c, c1, 3),
        ("cv_first_2", c, c1, 1),
        ("cv_block_1", c, 2 * c, 1),
        ("cv_block_2_0", dim_hid, 2 * c, 1),
        ("cv_block_2_1", dim_hid, 1, 3),          # depthwise (groups = dim_hid)
        ("cv_block_2_2", c, dim_hid, 1),
        ("m0_cv1", c, c, 1),
        ("m0_cv2", c, c, 1),
        ("t0_cv1", c, c, 3),
        ("t0_cv2", c, c, 1),
        ("cv_final", c2, (4 + 2 * n) * c, 1),
    ]
    P = {}
    for i, (name, cout, cin_g, k) in enumerate(layers):
        kw, kg, kb = jax.random.split(jax.random.fold_in(key, i), 3)
        fan_in = cin_g * k * k
        w = jax.random.normal(kw, (cout, cin_g, k, k), jnp.float32) / np.sqrt(fan_in)
        g = 1.0 + 0.1 * jax.random.normal(kg, (cout,), jnp.float32)
        b = 0.1 * jax.random.normal(kb, (cout,), jnp.float32)
        P[name] = (w, g, b)
    return P, c, dim_hid


# ----------------------------------------------------------------------------
if __name__ == "__main__":
    key = jax.random.PRNGKey(0)
    c1, c2 = 8, 16            # -> c = 8, dim_hid = 16, concat width = 6c = 48
    Nb, H, W = 4, 16, 16      # batch 4 -> 4 grid steps (>= 2 per v7x TensorCore)

    P, c, dim_hid = init_params(jax.random.fold_in(key, 100), c1, c2)
    x = jax.random.normal(jax.random.fold_in(key, 200), (Nb, c1, H, W), jnp.float32)

    fwd = jax.jit(famnet_pallas)
    out = jax.block_until_ready(fwd(x, P))
    assert out.shape == (Nb, c2, H, W)

    ref = jax.block_until_ready(famnet_ref(x, P))
    # bf16 MXU operands + approximate EUP reciprocal in SiLU -> relaxed tolerance
    np.testing.assert_allclose(np.asarray(out), np.asarray(ref), rtol=2e-2, atol=2e-2)

    print("KERNEL_OK")
</pallas_src>

<mosaic_0001>
module attributes {stable_mosaic.version = 11 : i64} {
  func.func @_famnet_kernel(%arg0: i32, %arg1: memref<1x8x256xf32, #tpu.memory_space<vmem>>, %arg2: memref<9x1x256xf32, #tpu.memory_space<vmem>>, %arg3: memref<16x72xbf16, #tpu.memory_space<vmem>>, %arg4: memref<16x1xf32, #tpu.memory_space<vmem>>, %arg5: memref<32x16xbf16, #tpu.memory_space<vmem>>, %arg6: memref<32x1xf32, #tpu.memory_space<vmem>>, %arg7: memref<9x16x1xf32, #tpu.memory_space<vmem>>, %arg8: memref<16x1xf32, #tpu.memory_space<vmem>>, %arg9: memref<8x16xbf16, #tpu.memory_space<vmem>>, %arg10: memref<8x1xf32, #tpu.memory_space<vmem>>, %arg11: memref<8x8xbf16, #tpu.memory_space<vmem>>, %arg12: memref<8x1xf32, #tpu.memory_space<vmem>>, %arg13: memref<8x72xbf16, #tpu.memory_space<vmem>>, %arg14: memref<8x1xf32, #tpu.memory_space<vmem>>, %arg15: memref<8x8xbf16, #tpu.memory_space<vmem>>, %arg16: memref<8x1xf32, #tpu.memory_space<vmem>>, %arg17: memref<16x48xbf16, #tpu.memory_space<vmem>>, %arg18: memref<16x1xf32, #tpu.memory_space<vmem>>, %arg19: memref<1x16x256xf32, #tpu.memory_space<vmem>>) attributes {dimension_semantics = [#tpu.dimension_semantics<parallel>], iteration_bounds = array<i64: 4>, scalar_prefetch = 0 : i64, scratch_operands = 0 : i64, tpu.core_type = #tpu.core_type<tc>, window_params = [{transform_indices = @transform_0, window_bounds = array<i64: 1, 8, 256>}, {pipeline_mode = #tpu.pipeline_mode<synchronous>, transform_indices = @transform_1, window_bounds = array<i64: 9, 1, 256>}, {pipeline_mode = #tpu.pipeline_mode<synchronous>, transform_indices = @transform_2, window_bounds = array<i64: 16, 72>}, {pipeline_mode = #tpu.pipeline_mode<synchronous>, transform_indices = @transform_3, window_bounds = array<i64: 16, 1>}, {pipeline_mode = #tpu.pipeline_mode<synchronous>, transform_indices = @transform_4, window_bounds = array<i64: 32, 16>}, {pipeline_mode = #tpu.pipeline_mode<synchronous>, transform_indices = @transform_5, window_bounds = array<i64: 32, 1>}, {pipeline_mode = #tpu.pipeline_mode<synchronous>, transform_indices = @transform_6, window_bounds = array<i64: 9, 16, 1>}, {pipeline_mode = #tpu.pipeline_mode<synchronous>, transform_indices = @transform_7, window_bounds = array<i64: 16, 1>}, {pipeline_mode = #tpu.pipeline_mode<synchronous>, transform_indices = @transform_8, window_bounds = array<i64: 8, 16>}, {pipeline_mode = #tpu.pipeline_mode<synchronous>, transform_indices = @transform_9, window_bounds = array<i64: 8, 1>}, {pipeline_mode = #tpu.pipeline_mode<synchronous>, transform_indices = @transform_10, window_bounds = array<i64: 8, 8>}, {pipeline_mode = #tpu.pipeline_mode<synchronous>, transform_indices = @transform_11, window_bounds = array<i64: 8, 1>}, {pipeline_mode = #tpu.pipeline_mode<synchronous>, transform_indices = @transform_12, window_bounds = array<i64: 8, 72>}, {pipeline_mode = #tpu.pipeline_mode<synchronous>, transform_indices = @transform_13, window_bounds = array<i64: 8, 1>}, {pipeline_mode = #tpu.pipeline_mode<synchronous>, transform_indices = @transform_14, window_bounds = array<i64: 8, 8>}, {pipeline_mode = #tpu.pipeline_mode<synchronous>, transform_indices = @transform_15, window_bounds = array<i64: 8, 1>}, {pipeline_mode = #tpu.pipeline_mode<synchronous>, transform_indices = @transform_16, window_bounds = array<i64: 16, 48>}, {pipeline_mode = #tpu.pipeline_mode<synchronous>, transform_indices = @transform_17, window_bounds = array<i64: 16, 1>}, {transform_indices = @transform_18, window_bounds = array<i64: 1, 16, 256>}]} {
    %c0 = arith.constant 0 : index
    %c0_0 = arith.constant 0 : index
    %c0_1 = arith.constant 0 : index
    %0 = vector.load %arg1[%c0, %c0_0, %c0_1] : memref<1x8x256xf32, #tpu.memory_space<vmem>>, vector<1x8x256xf32>
    %1 = vector.shape_cast %0 : vector<1x8x256xf32> to vector<8x256xf32>
    %2 = vector.extract_strided_slice %1 {offsets = [0, 239], sizes = [8, 17], strides = [1, 1]} : vector<8x256xf32> to vector<8x17xf32>
    %3 = vector.extract_strided_slice %1 {offsets = [0, 0], sizes = [8, 239], strides = [1, 1]} : vector<8x256xf32> to vector<8x239xf32>
    %4 = tpu.concatenate %2, %3 in 1 : vector<8x17xf32>, vector<8x239xf32> -> vector<8x256xf32>
    %c0_2 = arith.constant 0 : index
    %c0_3 = arith.constant 0 : index
    %c0_4 = arith.constant 0 : index
    %5 = vector.load %arg2[%c0_2, %c0_3, %c0_4] : memref<9x1x256xf32, #tpu.memory_space<vmem>>, vector<1x1x256xf32>
    %6 = vector.shape_cast %5 : vector<1x1x256xf32> to vector<1x256xf32>
    %7 = vector.broadcast %6 : vector<1x256xf32> to vector<8x256xf32>
    %8 = arith.mulf %4, %7 : vector<8x256xf32>
    %9 = vector.extract_strided_slice %1 {offsets = [0, 240], sizes = [8, 16], strides = [1, 1]} : vector<8x256xf32> to vector<8x16xf32>
    %10 = vector.extract_strided_slice %1 {offsets = [0, 0], sizes = [8, 240], strides = [1, 1]} : vector<8x256xf32> to vector<8x240xf32>
    %11 = tpu.concatenate %9, %10 in 1 : vector<8x16xf32>, vector<8x240xf32> -> vector<8x256xf32>
    %c1 = arith.constant 1 : index
    %c0_5 = arith.constant 0 : index
    %c0_6 = arith.constant 0 : index
    %12 = vector.load %arg2[%c1, %c0_5, %c0_6] : memref<9x1x256xf32, #tpu.memory_space<vmem>>, vector<1x1x256xf32>
    %13 = vector.shape_cast %12 : vector<1x1x256xf32> to vector<1x256xf32>
    %14 = vector.broadcast %13 : vector<1x256xf32> to vector<8x256xf32>
    %15 = arith.mulf %11, %14 : vector<8x256xf32>
    %16 = vector.extract_strided_slice %1 {offsets = [0, 241], sizes = [8, 15], strides = [1, 1]} : vector<8x256xf32> to vector<8x15xf32>
    %17 = vector.extract_strided_slice %1 {offsets = [0, 0], sizes = [8, 241], strides = [1, 1]} : vector<8x256xf32> to vector<8x241xf32>
    %18 = tpu.concatenate %16, %17 in 1 : vector<8x15xf32>, vector<8x241xf32> -> vector<8x256xf32>
    %c2 = arith.constant 2 : index
    %c0_7 = arith.constant 0 : index
    %c0_8 = arith.constant 0 : index
    %19 = vector.load %arg2[%c2, %c0_7, %c0_8] : memref<9x1x256xf32, #tpu.memory_space<vmem>>, vector<1x1x256xf32>
    %20 = vector.shape_cast %19 : vector<1x1x256xf32> to vector<1x256xf32>
    %21 = vector.broadcast %20 : vector<1x256xf32> to vector<8x256xf32>
    %22 = arith.mulf %18, %21 : vector<8x256xf32>
    %23 = vector.extract_strided_slice %1 {offsets = [0, 255], sizes = [8, 1], strides = [1, 1]} : vector<8x256xf32> to vector<8x1xf32>
    %24 = vector.extract_strided_slice %1 {offsets = [0, 0], sizes = [8, 255], strides = [1, 1]} : vector<8x256xf32> to vector<8x255xf32>
    %25 = tpu.concatenate %23, %24 in 1 : vector<8x1xf32>, vector<8x255xf32> -> vector<8x256xf32>
    %c3 = arith.constant 3 : index
    %c0_9 = arith.constant 0 : index
    %c0_10 = arith.constant 0 : index
    %26 = vector.load %arg2[%c3, %c0_9, %c0_10] : memref<9x1x256xf32, #tpu.memory_space<vmem>>, vector<1x1x256xf32>
    %27 = vector.shape_cast %26 : vector<1x1x256xf32> to vector<1x256xf32>
    %28 = vector.broadcast %27 : vector<1x256xf32> to vector<8x256xf32>
    %29 = arith.mulf %25, %28 : vector<8x256xf32>
    %30 = vector.extract_strided_slice %1 {offsets = [0, 1], sizes = [8, 255], strides = [1, 1]} : vector<8x256xf32> to vector<8x255xf32>
    %31 = vector.extract_strided_slice %1 {offsets = [0, 0], sizes = [8, 1], strides = [1, 1]} : vector<8x256xf32> to vector<8x1xf32>
    %32 = tpu.concatenate %30, %31 in 1 : vector<8x255xf32>, vector<8x1xf32> -> vector<8x256xf32>
    %c5 = arith.constant 5 : index
    %c0_11 = arith.constant 0 : index
    %c0_12 = arith.constant 0 : index
    %33 = vector.load %arg2[%c5, %c0_11, %c0_12] : memref<9x1x256xf32, #tpu.memory_space<vmem>>, vector<1x1x256xf32>
    %34 = vector.shape_cast %33 : vector<1x1x256xf32> to vector<1x256xf32>
    %35 = vector.broadcast %34 : vector<1x256xf32> to vector<8x256xf32>
    %36 = arith.mulf %32, %35 : vector<8x256xf32>
    %37 = vector.extract_strided_slice %1 {offsets = [0, 15], sizes = [8, 241], strides = [1, 1]} : vector<8x256xf32> to vector<8x241xf32>
    %38 = vector.extract_strided_slice %1 {offsets = [0, 0], sizes = [8, 15], strides = [1, 1]} : vector<8x256xf32> to vector<8x15xf32>
    %39 = tpu.concatenate %37, %38 in 1 : vector<8x241xf32>, vector<8x15xf32> -> vector<8x256xf32>
    %c6 = arith.constant 6 : index
    %c0_13 = arith.constant 0 : index
    %c0_14 = arith.constant 0 : index
    %40 = vector.load %arg2[%c6, %c0_13, %c0_14] : memref<9x1x256xf32, #tpu.memory_space<vmem>>, vector<1x1x256xf32>
    %41 = vector.shape_cast %40 : vector<1x1x256xf32> to vector<1x256xf32>
    %42 = vector.broadcast %41 : vector<1x256xf32> to vector<8x256xf32>
    %43 = arith.mulf %39, %42 : vector<8x256xf32>
    %44 = vector.extract_strided_slice %1 {offsets = [0, 16], sizes = [8, 240], strides = [1, 1]} : vector<8x256xf32> to vector<8x240xf32>
    %45 = vector.extract_strided_slice %1 {offsets = [0, 0], sizes = [8, 16], strides = [1, 1]} : vector<8x256xf32> to vector<8x16xf32>
    %46 = tpu.concatenate %44, %45 in 1 : vector<8x240xf32>, vector<8x16xf32> -> vector<8x256xf32>
    %c7 = arith.constant 7 : index
    %c0_15 = arith.constant 0 : index
    %c0_16 = arith.constant 0 : index
    %47 = vector.load %arg2[%c7, %c0_15, %c0_16] : memref<9x1x256xf32, #tpu.memory_space<vmem>>, vector<1x1x256xf32>
    %48 = vector.shape_cast %47 : vector<1x1x256xf32> to vector<1x256xf32>
    %49 = vector.broadcast %48 : vector<1x256xf32> to vector<8x256xf32>
    %50 = arith.mulf %46, %49 : vector<8x256xf32>
    %51 = vector.extract_strided_slice %1 {offsets = [0, 17], sizes = [8, 239], strides = [1, 1]} : vector<8x256xf32> to vector<8x239xf32>
    %52 = vector.extract_strided_slice %1 {offsets = [0, 0], sizes = [8, 17], strides = [1, 1]} : vector<8x256xf32> to vector<8x17xf32>
    %53 = tpu.concatenate %51, %52 in 1 : vector<8x239xf32>, vector<8x17xf32> -> vector<8x256xf32>
    %c8 = arith.constant 8 : index
    %c0_17 = arith.constant 0 : index
    %c0_18 = arith.constant 0 : index
    %54 = vector.load %arg2[%c8, %c0_17, %c0_18] : memref<9x1x256xf32, #tpu.memory_space<vmem>>, vector<1x1x256xf32>
    %55 = vector.shape_cast %54 : vector<1x1x256xf32> to vector<1x256xf32>
    %56 = vector.broadcast %55 : vector<1x256xf32> to vector<8x256xf32>
    %57 = arith.mulf %53, %56 : vector<8x256xf32>
    %58 = tpu.concatenate %8, %15, %22, %29, %1, %36, %43, %50, %57 in 0 : vector<8x256xf32>, vector<8x256xf32>, vector<8x256xf32>, vector<8x256xf32>, vector<8x256xf32>, vector<8x256xf32>, vector<8x256xf32>, vector<8x256xf32>, vector<8x256xf32> -> vector<72x256xf32>
    %59 = arith.truncf %58 : vector<72x256xf32> to vector<72x256xbf16>
    %c0_19 = arith.constant 0 : index
    %c0_20 = arith.constant 0 : index
    %60 = vector.load %arg3[%c0_19, %c0_20] : memref<16x72xbf16, #tpu.memory_space<vmem>>, vector<16x72xbf16>
    %cst = arith.constant dense<0.000000e+00> : vector<16x256xf32>
    %61 = tpu.matmul %60, %59, %cst {dimension_numbers = #tpu.dot_dimension_numbers<[1], [0], [0], [1], [0, 0, 1, 1], [], []>} : vector<16x72xbf16>, vector<72x256xbf16>, vector<16x256xf32> -> vector<16x256xf32>
    %c0_21 = arith.constant 0 : index
    %c0_22 = arith.constant 0 : index
    %62 = vector.load %arg4[%c0_21, %c0_22] : memref<16x1xf32, #tpu.memory_space<vmem>>, vector<16x1xf32>
    %63 = vector.broadcast %62 : vector<16x1xf32> to vector<16x256xf32>
    %64 = arith.addf %61, %63 : vector<16x256xf32>
    %cst_23 = arith.constant 0.000000e+00 : f32
    %65 = vector.broadcast %cst_23 : f32 to vector<16x256xf32>
    %66 = arith.subf %65, %64 : vector<16x256xf32>
    %67 = math.exp %66 : vector<16x256xf32>
    %cst_24 = arith.constant 1.000000e+00 : f32
    %68 = vector.broadcast %cst_24 : f32 to vector<16x256xf32>
    %69 = arith.addf %68, %67 : vector<16x256xf32>
    %70 = tpu.reciprocal %69 {approx = true} : vector<16x256xf32> -> vector<16x256xf32>
    %71 = arith.mulf %64, %70 : vector<16x256xf32>
    %72 = vector.extract_strided_slice %71 {offsets = [0, 0], sizes = [8, 256], strides = [1, 1]} : vector<16x256xf32> to vector<8x256xf32>
    %73 = vector.extract_strided_slice %71 {offsets = [8, 0], sizes = [8, 256], strides = [1, 1]} : vector<16x256xf32> to vector<8x256xf32>
    %74 = arith.truncf %71 : vector<16x256xf32> to vector<16x256xbf16>
    %c0_25 = arith.constant 0 : index
    %c0_26 = arith.constant 0 : index
    %75 = vector.load %arg5[%c0_25, %c0_26] : memref<32x16xbf16, #tpu.memory_space<vmem>>, vector<32x16xbf16>
    %cst_27 = arith.constant dense<0.000000e+00> : vector<32x256xf32>
    %76 = tpu.matmul %75, %74, %cst_27 {dimension_numbers = #tpu.dot_dimension_numbers<[1], [0], [0], [1], [0, 0, 1, 1], [], []>} : vector<32x16xbf16>, vector<16x256xbf16>, vector<32x256xf32> -> vector<32x256xf32>
    %c0_28 = arith.constant 0 : index
    %c0_29 = arith.constant 0 : index
    %77 = vector.load %arg6[%c0_28, %c0_29] : memref<32x1xf32, #tpu.memory_space<vmem>>, vector<32x1xf32>
    %78 = vector.broadcast %77 : vector<32x1xf32> to vector<32x256xf32>
    %79 = arith.addf %76, %78 : vector<32x256xf32>
    %cst_30 = arith.constant 0.000000e+00 : f32
    %80 = vector.broadcast %cst_30 : f32 to vector<32x256xf32>
    %81 = arith.subf %80, %79 : vector<32x256xf32>
    %82 = math.exp %81 : vector<32x256xf32>
    %cst_31 = arith.constant 1.000000e+00 : f32
    %83 = vector.broadcast %cst_31 : f32 to vector<32x256xf32>
    %84 = arith.addf %83, %82 : vector<32x256xf32>
    %85 = tpu.reciprocal %84 {approx = true} : vector<32x256xf32> -> vector<32x256xf32>
    %86 = arith.mulf %79, %85 : vector<32x256xf32>
    %87 = vector.extract_strided_slice %86 {offsets = [0, 0], sizes = [8, 256], strides = [1, 1]} : vector<32x256xf32> to vector<8x256xf32>
    %88 = vector.extract_strided_slice %86 {offsets = [8, 0], sizes = [16, 256], strides = [1, 1]} : vector<32x256xf32> to vector<16x256xf32>
    %89 = vector.extract_strided_slice %86 {offsets = [24, 0], sizes = [8, 256], strides = [1, 1]} : vector<32x256xf32> to vector<8x256xf32>
    %90 = arith.truncf %89 : vector<8x256xf32> to vector<8x256xbf16>
    %c0_32 = arith.constant 0 : index
    %c0_33 = arith.constant 0 : index
    %91 = vector.load %arg11[%c0_32, %c0_33] : memref<8x8xbf16, #tpu.memory_space<vmem>>, vector<8x8xbf16>
    %cst_34 = arith.constant dense<0.000000e+00> : vector<8x256xf32>
    %92 = tpu.matmul %91, %90, %cst_34 {dimension_numbers = #tpu.dot_dimension_numbers<[1], [0], [0], [1], [0, 0, 1, 1], [], []>} : vector<8x8xbf16>, vector<8x256xbf16>, vector<8x256xf32> -> vector<8x256xf32>
    %c0_35 = arith.constant 0 : index
    %c0_36 = arith.constant 0 : index
    %93 = vector.load %arg12[%c0_35, %c0_36] : memref<8x1xf32, #tpu.memory_space<vmem>>, vector<8x1xf32>
    %94 = vector.broadcast %93 : vector<8x1xf32> to vector<8x256xf32>
    %95 = arith.addf %92, %94 : vector<8x256xf32>
    %cst_37 = arith.constant 0.000000e+00 : f32
    %96 = vector.broadcast %cst_37 : f32 to vector<8x256xf32>
    %97 = arith.subf %96, %95 : vector<8x256xf32>
    %98 = math.exp %97 : vector<8x256xf32>
    %cst_38 = arith.constant 1.000000e+00 : f32
    %99 = vector.broadcast %cst_38 : f32 to vector<8x256xf32>
    %100 = arith.addf %99, %98 : vector<8x256xf32>
    %101 = tpu.reciprocal %100 {approx = true} : vector<8x256xf32> -> vector<8x256xf32>
    %102 = arith.mulf %95, %101 : vector<8x256xf32>
    %c4 = arith.constant 4 : index
    %c0_39 = arith.constant 0 : index
    %c0_40 = arith.constant 0 : index
    %103 = vector.load %arg7[%c4, %c0_39, %c0_40] : memref<9x16x1xf32, #tpu.memory_space<vmem>>, vector<1x16x1xf32>
    %104 = vector.shape_cast %103 : vector<1x16x1xf32> to vector<16x1xf32>
    %105 = vector.broadcast %104 : vector<16x1xf32> to vector<16x256xf32>
    %106 = arith.mulf %105, %88 : vector<16x256xf32>
    %c0_41 = arith.constant 0 : index
    %c0_42 = arith.constant 0 : index
    %c0_43 = arith.constant 0 : index
    %107 = vector.load %arg7[%c0_41, %c0_42, %c0_43] : memref<9x16x1xf32, #tpu.memory_space<vmem>>, vector<1x16x1xf32>
    %108 = vector.shape_cast %107 : vector<1x16x1xf32> to vector<16x1xf32>
    %109 = vector.extract_strided_slice %88 {offsets = [0, 239], sizes = [16, 17], strides = [1, 1]} : vector<16x256xf32> to vector<16x17xf32>
    %110 = vector.extract_strided_slice %88 {offsets = [0, 0], sizes = [16, 239], strides = [1, 1]} : vector<16x256xf32> to vector<16x239xf32>
    %111 = tpu.concatenate %109, %110 in 1 : vector<16x17xf32>, vector<16x239xf32> -> vector<16x256xf32>
    %c0_44 = arith.constant 0 : index
    %c0_45 = arith.constant 0 : index
    %c0_46 = arith.constant 0 : index
    %112 = vector.load %arg2[%c0_44, %c0_45, %c0_46] : memref<9x1x256xf32, #tpu.memory_space<vmem>>, vector<1x1x256xf32>
    %113 = vector.shape_cast %112 : vector<1x1x256xf32> to vector<1x256xf32>
    %114 = vector.broadcast %113 : vector<1x256xf32> to vector<16x256xf32>
    %115 = arith.mulf %111, %114 : vector<16x256xf32>
    %116 = vector.broadcast %108 : vector<16x1xf32> to vector<16x256xf32>
    %117 = arith.mulf %116, %115 : vector<16x256xf32>
    %118 = arith.addf %106, %117 : vector<16x256xf32>
    %c1_47 = arith.constant 1 : index
    %c0_48 = arith.constant 0 : index
    %c0_49 = arith.constant 0 : index
    %119 = vector.load %arg7[%c1_47, %c0_48, %c0_49] : memref<9x16x1xf32, #tpu.memory_space<vmem>>, vector<1x16x1xf32>
    %120 = vector.shape_cast %119 : vector<1x16x1xf32> to vector<16x1xf32>
    %121 = vector.extract_strided_slice %88 {offsets = [0, 240], sizes = [16, 16], strides = [1, 1]} : vector<16x256xf32> to vector<16x16xf32>
    %122 = vector.extract_strided_slice %88 {offsets = [0, 0], sizes = [16, 240], strides = [1, 1]} : vector<16x256xf32> to vector<16x240xf32>
    %123 = tpu.concatenate %121, %122 in 1 : vector<16x16xf32>, vector<16x240xf32> -> vector<16x256xf32>
    %c1_50 = arith.constant 1 : index
    %c0_51 = arith.constant 0 : index
    %c0_52 = arith.constant 0 : index
    %124 = vector.load %arg2[%c1_50, %c0_51, %c0_52] : memref<9x1x256xf32, #tpu.memory_space<vmem>>, vector<1x1x256xf32>
    %125 = vector.shape_cast %124 : vector<1x1x256xf32> to vector<1x256xf32>
    %126 = vector.broadcast %125 : vector<1x256xf32> to vector<16x256xf32>
    %127 = arith.mulf %123, %126 : vector<16x256xf32>
    %128 = vector.broadcast %120 : vector<16x1xf32> to vector<16x256xf32>
    %129 = arith.mulf %128, %127 : vector<16x256xf32>
    %130 = arith.addf %118, %129 : vector<16x256xf32>
    %c2_53 = arith.constant 2 : index
    %c0_54 = arith.constant 0 : index
    %c0_55 = arith.constant 0 : index
    %131 = vector.load %arg7[%c2_53, %c0_54, %c0_55] : memref<9x16x1xf32, #tpu.memory_space<vmem>>, vector<1x16x1xf32>
    %132 = vector.shape_cast %131 : vector<1x16x1xf32> to vector<16x1xf32>
    %133 = vector.extract_strided_slice %88 {offsets = [0, 241], sizes = [16, 15], strides = [1, 1]} : vector<16x256xf32> to vector<16x15xf32>
    %134 = vector.extract_strided_slice %88 {offsets = [0, 0], sizes = [16, 241], strides = [1, 1]} : vector<16x256xf32> to vector<16x241xf32>
    %135 = tpu.concatenate %133, %134 in 1 : vector<16x15xf32>, vector<16x241xf32> -> vector<16x256xf32>
    %c2_56 = arith.constant 2 : index
    %c0_57 = arith.constant 0 : index
    %c0_58 = arith.constant 0 : index
    %136 = vector.load %arg2[%c2_56, %c0_57, %c0_58] : memref<9x1x256xf32, #tpu.memory_space<vmem>>, vector<1x1x256xf32>
    %137 = vector.shape_cast %136 : vector<1x1x256xf32> to vector<1x256xf32>
    %138 = vector.broadcast %137 : vector<1x256xf32> to vector<16x256xf32>
    %139 = arith.mulf %135, %138 : vector<16x256xf32>
    %140 = vector.broadcast %132 : vector<16x1xf32> to vector<16x256xf32>
    %141 = arith.mulf %140, %139 : vector<16x256xf32>
    %142 = arith.addf %130, %141 : vector<16x256xf32>
    %c3_59 = arith.constant 3 : index
    %c0_60 = arith.constant 0 : index
    %c0_61 = arith.constant 0 : index
    %143 = vector.load %arg7[%c3_59, %c0_60, %c0_61] : memref<9x16x1xf32, #tpu.memory_space<vmem>>, vector<1x16x1xf32>
    %144 = vector.shape_cast %143 : vector<1x16x1xf32> to vector<16x1xf32>
    %145 = vector.extract_strided_slice %88 {offsets = [0, 255], sizes = [16, 1], strides = [1, 1]} : vector<16x256xf32> to vector<16x1xf32>
    %146 = vector.extract_strided_slice %88 {offsets = [0, 0], sizes = [16, 255], strides = [1, 1]} : vector<16x256xf32> to vector<16x255xf32>
    %147 = tpu.concatenate %145, %146 in 1 : vector<16x1xf32>, vector<16x255xf32> -> vector<16x256xf32>
    %c3_62 = arith.constant 3 : index
    %c0_63 = arith.constant 0 : index
    %c0_64 = arith.constant 0 : index
    %148 = vector.load %arg2[%c3_62, %c0_63, %c0_64] : memref<9x1x256xf32, #tpu.memory_space<vmem>>, vector<1x1x256xf32>
    %149 = vector.shape_cast %148 : vector<1x1x256xf32> to vector<1x256xf32>
    %150 = vector.broadcast %149 : vector<1x256xf32> to vector<16x256xf32>
    %151 = arith.mulf %147, %150 : vector<16x256xf32>
    %152 = vector.broadcast %144 : vector<16x1xf32> to vector<16x256xf32>
    %153 = arith.mulf %152, %151 : vector<16x256xf32>
    %154 = arith.addf %142, %153 : vector<16x256xf32>
    %c5_65 = arith.constant 5 : index
    %c0_66 = arith.constant 0 : index
    %c0_67 = arith.constant 0 : index
    %155 = vector.load %arg7[%c5_65, %c0_66, %c0_67] : memref<9x16x1xf32, #tpu.memory_space<vmem>>, vector<1x16x1xf32>
    %156 = vector.shape_cast %155 : vector<1x16x1xf32> to vector<16x1xf32>
    %157 = vector.extract_strided_slice %88 {offsets = [0, 1], sizes = [16, 255], strides = [1, 1]} : vector<16x256xf32> to vector<16x255xf32>
    %158 = vector.extract_strided_slice %88 {offsets = [0, 0], sizes = [16, 1], strides = [1, 1]} : vector<16x256xf32> to vector<16x1xf32>
    %159 = tpu.concatenate %157, %158 in 1 : vector<16x255xf32>, vector<16x1xf32> -> vector<16x256xf32>
    %c5_68 = arith.constant 5 : index
    %c0_69 = arith.constant 0 : index
    %c0_70 = arith.constant 0 : index
    %160 = vector.load %arg2[%c5_68, %c0_69, %c0_70] : memref<9x1x256xf32, #tpu.memory_space<vmem>>, vector<1x1x256xf32>
    %161 = vector.shape_cast %160 : vector<1x1x256xf32> to vector<1x256xf32>
    %162 = vector.broadcast %161 : vector<1x256xf32> to vector<16x256xf32>
    %163 = arith.mulf %159, %162 : vector<16x256xf32>
    %164 = vector.broadcast %156 : vector<16x1xf32> to vector<16x256xf32>
    %165 = arith.mulf %164, %163 : vector<16x256xf32>
    %166 = arith.addf %154, %165 : vector<16x256xf32>
    %c6_71 = arith.constant 6 : index
    %c0_72 = arith.constant 0 : index
    %c0_73 = arith.constant 0 : index
    %167 = vector.load %arg7[%c6_71, %c0_72, %c0_73] : memref<9x16x1xf32, #tpu.memory_space<vmem>>, vector<1x16x1xf32>
    %168 = vector.shape_cast %167 : vector<1x16x1xf32> to vector<16x1xf32>
    %169 = vector.extract_strided_slice %88 {offsets = [0, 15], sizes = [16, 241], strides = [1, 1]} : vector<16x256xf32> to vector<16x241xf32>
    %170 = vector.extract_strided_slice %88 {offsets = [0, 0], sizes = [16, 15], strides = [1, 1]} : vector<16x256xf32> to vector<16x15xf32>
    %171 = tpu.concatenate %169, %170 in 1 : vector<16x241xf32>, vector<16x15xf32> -> vector<16x256xf32>
    %c6_74 = arith.constant 6 : index
    %c0_75 = arith.constant 0 : index
    %c0_76 = arith.constant 0 : index
    %172 = vector.load %arg2[%c6_74, %c0_75, %c0_76] : memref<9x1x256xf32, #tpu.memory_space<vmem>>, vector<1x1x256xf32>
    %173 = vector.shape_cast %172 : vector<1x1x256xf32> to vector<1x256xf32>
    %174 = vector.broadcast %173 : vector<1x256xf32> to vector<16x256xf32>
    %175 = arith.mulf %171, %174 : vector<16x256xf32>
    %176 = vector.broadcast %168 : vector<16x1xf32> to vector<16x256xf32>
    %177 = arith.mulf %176, %175 : vector<16x256xf32>
    %178 = arith.addf %166, %177 : vector<16x256xf32>
    %c7_77 = arith.constant 7 : index
    %c0_78 = arith.constant 0 : index
    %c0_79 = arith.constant 0 : index
    %179 = vector.load %arg7[%c7_77, %c0_78, %c0_79] : memref<9x16x1xf32, #tpu.memory_space<vmem>>, vector<1x16x1xf32>
    %180 = vector.shape_cast %179 : vector<1x16x1xf32> to vector<16x1xf32>
    %181 = vector.extract_strided_slice %88 {offsets = [0, 16], sizes = [16, 240], strides = [1, 1]} : vector<16x256xf32> to vector<16x240xf32>
    %182 = vector.extract_strided_slice %88 {offsets = [0, 0], sizes = [16, 16], strides = [1, 1]} : vector<16x256xf32> to vector<16x16xf32>
    %183 = tpu.concatenate %181, %182 in 1 : vector<16x240xf32>, vector<16x16xf32> -> vector<16x256xf32>
    %c7_80 = arith.constant 7 : index
    %c0_81 = arith.constant 0 : index
    %c0_82 = arith.constant 0 : index
    %184 = vector.load %arg2[%c7_80, %c0_81, %c0_82] : memref<9x1x256xf32, #tpu.memory_space<vmem>>, vector<1x1x256xf32>
    %185 = vector.shape_cast %184 : vector<1x1x256xf32> to vector<1x256xf32>
    %186 = vector.broadcast %185 : vector<1x256xf32> to vector<16x256xf32>
    %187 = arith.mulf %183, %186 : vector<16x256xf32>
    %188 = vector.broadcast %180 : vector<16x1xf32> to vector<16x256xf32>
    %189 = arith.mulf %188, %187 : vector<16x256xf32>
    %190 = arith.addf %178, %189 : vector<16x256xf32>
    %c8_83 = arith.constant 8 : index
    %c0_84 = arith.constant 0 : index
    %c0_85 = arith.constant 0 : index
    %191 = vector.load %arg7[%c8_83, %c0_84, %c0_85] : memref<9x16x1xf32, #tpu.memory_space<vmem>>, vector<1x16x1xf32>
    %192 = vector.shape_cast %191 : vector<1x16x1xf32> to vector<16x1xf32>
    %193 = vector.extract_strided_slice %88 {offsets = [0, 17], sizes = [16, 239], strides = [1, 1]} : vector<16x256xf32> to vector<16x239xf32>
    %194 = vector.extract_strided_slice %88 {offsets = [0, 0], sizes = [16, 17], strides = [1, 1]} : vector<16x256xf32> to vector<16x17xf32>
    %195 = tpu.concatenate %193, %194 in 1 : vector<16x239xf32>, vector<16x17xf32> -> vector<16x256xf32>
    %c8_86 = arith.constant 8 : index
    %c0_87 = arith.constant 0 : index
    %c0_88 = arith.constant 0 : index
    %196 = vector.load %arg2[%c8_86, %c0_87, %c0_88] : memref<9x1x256xf32, #tpu.memory_space<vmem>>, vector<1x1x256xf32>
    %197 = vector.shape_cast %196 : vector<1x1x256xf32> to vector<1x256xf32>
    %198 = vector.broadcast %197 : vector<1x256xf32> to vector<16x256xf32>
    %199 = arith.mulf %195, %198 : vector<16x256xf32>
    %200 = vector.broadcast %192 : vector<16x1xf32> to vector<16x256xf32>
    %201 = arith.mulf %200, %199 : vector<16x256xf32>
    %202 = arith.addf %190, %201 : vector<16x256xf32>
    %c0_89 = arith.constant 0 : index
    %c0_90 = arith.constant 0 : index
    %203 = vector.load %arg8[%c0_89, %c0_90] : memref<16x1xf32, #tpu.memory_space<vmem>>, vector<16x1xf32>
    %204 = vector.broadcast %203 : vector<16x1xf32> to vector<16x256xf32>
    %205 = arith.addf %202, %204 : vector<16x256xf32>
    %cst_91 = arith.constant 0.000000e+00 : f32
    %206 = vector.broadcast %cst_91 : f32 to vector<16x256xf32>
    %207 = arith.subf %206, %205 : vector<16x256xf32>
    %208 = math.exp %207 : vector<16x256xf32>
    %cst_92 = arith.constant 1.000000e+00 : f32
    %209 = vector.broadcast %cst_92 : f32 to vector<16x256xf32>
    %210 = arith.addf %209, %208 : vector<16x256xf32>
    %211 = tpu.reciprocal %210 {approx = true} : vector<16x256xf32> -> vector<16x256xf32>
    %212 = arith.mulf %205, %211 : vector<16x256xf32>
    %213 = arith.truncf %212 : vector<16x256xf32> to vector<16x256xbf16>
    %c0_93 = arith.constant 0 : index
    %c0_94 = arith.constant 0 : index
    %214 = vector.load %arg9[%c0_93, %c0_94] : memref<8x16xbf16, #tpu.memory_space<vmem>>, vector<8x16xbf16>
    %cst_95 = arith.constant dense<0.000000e+00> : vector<8x256xf32>
    %215 = tpu.matmul %214, %213, %cst_95 {dimension_numbers = #tpu.dot_dimension_numbers<[1], [0], [0], [1], [0, 0, 1, 1], [], []>} : vector<8x16xbf16>, vector<16x256xbf16>, vector<8x256xf32> -> vector<8x256xf32>
    %c0_96 = arith.constant 0 : index
    %c0_97 = arith.constant 0 : index
    %216 = vector.load %arg10[%c0_96, %c0_97] : memref<8x1xf32, #tpu.memory_space<vmem>>, vector<8x1xf32>
    %217 = vector.broadcast %216 : vector<8x1xf32> to vector<8x256xf32>
    %218 = arith.addf %215, %217 : vector<8x256xf32>
    %cst_98 = arith.constant 0.000000e+00 : f32
    %219 = vector.broadcast %cst_98 : f32 to vector<8x256xf32>
    %220 = arith.subf %219, %218 : vector<8x256xf32>
    %221 = math.exp %220 : vector<8x256xf32>
    %cst_99 = arith.constant 1.000000e+00 : f32
    %222 = vector.broadcast %cst_99 : f32 to vector<8x256xf32>
    %223 = arith.addf %222, %221 : vector<8x256xf32>
    %224 = tpu.reciprocal %223 {approx = true} : vector<8x256xf32> -> vector<8x256xf32>
    %225 = arith.mulf %218, %224 : vector<8x256xf32>
    %226 = vector.extract_strided_slice %73 {offsets = [0, 239], sizes = [8, 17], strides = [1, 1]} : vector<8x256xf32> to vector<8x17xf32>
    %227 = vector.extract_strided_slice %73 {offsets = [0, 0], sizes = [8, 239], strides = [1, 1]} : vector<8x256xf32> to vector<8x239xf32>
    %228 = tpu.concatenate %226, %227 in 1 : vector<8x17xf32>, vector<8x239xf32> -> vector<8x256xf32>
    %c0_100 = arith.constant 0 : index
    %c0_101 = arith.constant 0 : index
    %c0_102 = arith.constant 0 : index
    %229 = vector.load %arg2[%c0_100, %c0_101, %c0_102] : memref<9x1x256xf32, #tpu.memory_space<vmem>>, vector<1x1x256xf32>
    %230 = vector.shape_cast %229 : vector<1x1x256xf32> to vector<1x256xf32>
    %231 = vector.broadcast %230 : vector<1x256xf32> to vector<8x256xf32>
    %232 = arith.mulf %228, %231 : vector<8x256xf32>
    %233 = vector.extract_strided_slice %73 {offsets = [0, 240], sizes = [8, 16], strides = [1, 1]} : vector<8x256xf32> to vector<8x16xf32>
    %234 = vector.extract_strided_slice %73 {offsets = [0, 0], sizes = [8, 240], strides = [1, 1]} : vector<8x256xf32> to vector<8x240xf32>
    %235 = tpu.concatenate %233, %234 in 1 : vector<8x16xf32>, vector<8x240xf32> -> vector<8x256xf32>
    %c1_103 = arith.constant 1 : index
    %c0_104 = arith.constant 0 : index
    %c0_105 = arith.constant 0 : index
    %236 = vector.load %arg2[%c1_103, %c0_104, %c0_105] : memref<9x1x256xf32, #tpu.memory_space<vmem>>, vector<1x1x256xf32>
    %237 = vector.shape_cast %236 : vector<1x1x256xf32> to vector<1x256xf32>
    %238 = vector.broadcast %237 : vector<1x256xf32> to vector<8x256xf32>
    %239 = arith.mulf %235, %238 : vector<8x256xf32>
    %240 = vector.extract_strided_slice %73 {offsets = [0, 241], sizes = [8, 15], strides = [1, 1]} : vector<8x256xf32> to vector<8x15xf32>
    %241 = vector.extract_strided_slice %73 {offsets = [0, 0], sizes = [8, 241], strides = [1, 1]} : vector<8x256xf32> to vector<8x241xf32>
    %242 = tpu.concatenate %240, %241 in 1 : vector<8x15xf32>, vector<8x241xf32> -> vector<8x256xf32>
    %c2_106 = arith.constant 2 : index
    %c0_107 = arith.constant 0 : index
    %c0_108 = arith.constant 0 : index
    %243 = vector.load %arg2[%c2_106, %c0_107, %c0_108] : memref<9x1x256xf32, #tpu.memory_space<vmem>>, vector<1x1x256xf32>
    %244 = vector.shape_cast %243 : vector<1x1x256xf32> to vector<1x256xf32>
    %245 = vector.broadcast %244 : vector<1x256xf32> to vector<8x256xf32>
    %246 = arith.mulf %242, %245 : vector<8x256xf32>
    %247 = vector.extract_strided_slice %73 {offsets = [0, 255], sizes = [8, 1], strides = [1, 1]} : vector<8x256xf32> to vector<8x1xf32>
    %248 = vector.extract_strided_slice %73 {offsets = [0, 0], sizes = [8, 255], strides = [1, 1]} : vector<8x256xf32> to vector<8x255xf32>
    %249 = tpu.concatenate %247, %248 in 1 : vector<8x1xf32>, vector<8x255xf32> -> vector<8x256xf32>
    %c3_109 = arith.constant 3 : index
    %c0_110 = arith.constant 0 : index
    %c0_111 = arith.constant 0 : index
    %250 = vector.load %arg2[%c3_109, %c0_110, %c0_111] : memref<9x1x256xf32, #tpu.memory_space<vmem>>, vector<1x1x256xf32>
    %251 = vector.shape_cast %250 : vector<1x1x256xf32> to vector<1x256xf32>
    %252 = vector.broadcast %251 : vector<1x256xf32> to vector<8x256xf32>
    %253 = arith.mulf %249, %252 : vector<8x256xf32>
    %254 = vector.extract_strided_slice %73 {offsets = [0, 1], sizes = [8, 255], strides = [1, 1]} : vector<8x256xf32> to vector<8x255xf32>
    %255 = vector.extract_strided_slice %73 {offsets = [0, 0], sizes = [8, 1], strides = [1, 1]} : vector<8x256xf32> to vector<8x1xf32>
    %256 = tpu.concatenate %254, %255 in 1 : vector<8x255xf32>, vector<8x1xf32> -> vector<8x256xf32>
    %c5_112 = arith.constant 5 : index
    %c0_113 = arith.constant 0 : index
    %c0_114 = arith.constant 0 : index
    %257 = vector.load %arg2[%c5_112, %c0_113, %c0_114] : memref<9x1x256xf32, #tpu.memory_space<vmem>>, vector<1x1x256xf32>
    %258 = vector.shape_cast %257 : vector<1x1x256xf32> to vector<1x256xf32>
    %259 = vector.broadcast %258 : vector<1x256xf32> to vector<8x256xf32>
    %260 = arith.mulf %256, %259 : vector<8x256xf32>
    %261 = vector.extract_strided_slice %73 {offsets = [0, 15], sizes = [8, 241], strides = [1, 1]} : vector<8x256xf32> to vector<8x241xf32>
    %262 = vector.extract_strided_slice %73 {offsets = [0, 0], sizes = [8, 15], strides = [1, 1]} : vector<8x256xf32> to vector<8x15xf32>
    %263 = tpu.concatenate %261, %262 in 1 : vector<8x241xf32>, vector<8x15xf32> -> vector<8x256xf32>
    %c6_115 = arith.constant 6 : index
    %c0_116 = arith.constant 0 : index
    %c0_117 = arith.constant 0 : index
    %264 = vector.load %arg2[%c6_115, %c0_116, %c0_117] : memref<9x1x256xf32, #tpu.memory_space<vmem>>, vector<1x1x256xf32>
    %265 = vector.shape_cast %264 : vector<1x1x256xf32> to vector<1x256xf32>
    %266 = vector.broadcast %265 : vector<1x256xf32> to vector<8x256xf32>
    %267 = arith.mulf %263, %266 : vector<8x256xf32>
    %268 = vector.extract_strided_slice %73 {offsets = [0, 16], sizes = [8, 240], strides = [1, 1]} : vector<8x256xf32> to vector<8x240xf32>
    %269 = vector.extract_strided_slice %73 {offsets = [0, 0], sizes = [8, 16], strides = [1, 1]} : vector<8x256xf32> to vector<8x16xf32>
    %270 = tpu.concatenate %268, %269 in 1 : vector<8x240xf32>, vector<8x16xf32> -> vector<8x256xf32>
    %c7_118 = arith.constant 7 : index
    %c0_119 = arith.constant 0 : index
    %c0_120 = arith.constant 0 : index
    %271 = vector.load %arg2[%c7_118, %c0_119, %c0_120] : memref<9x1x256xf32, #tpu.memory_space<vmem>>, vector<1x1x256xf32>
    %272 = vector.shape_cast %271 : vector<1x1x256xf32> to vector<1x256xf32>
    %273 = vector.broadcast %272 : vector<1x256xf32> to vector<8x256xf32>
    %274 = arith.mulf %270, %273 : vector<8x256xf32>
    %275 = vector.extract_strided_slice %73 {offsets = [0, 17], sizes = [8, 239], strides = [1, 1]} : vector<8x256xf32> to vector<8x239xf32>
    %276 = vector.extract_strided_slice %73 {offsets = [0, 0], sizes = [8, 17], strides = [1, 1]} : vector<8x256xf32> to vector<8x17xf32>
    %277 = tpu.concatenate %275, %276 in 1 : vector<8x239xf32>, vector<8x17xf32> -> vector<8x256xf32>
    %c8_121 = arith.constant 8 : index
    %c0_122 = arith.constant 0 : index
    %c0_123 = arith.constant 0 : index
    %278 = vector.load %arg2[%c8_121, %c0_122, %c0_123] : memref<9x1x256xf32, #tpu.memory_space<vmem>>, vector<1x1x256xf32>
    %279 = vector.shape_cast %278 : vector<1x1x256xf32> to vector<1x256xf32>
    %280 = vector.broadcast %279 : vector<1x256xf32> to vector<8x256xf32>
    %281 = arith.mulf %277, %280 : vector<8x256xf32>
    %282 = tpu.concatenate %232, %239, %246, %253, %73, %260, %267, %274, %281 in 0 : vector<8x256xf32>, vector<8x256xf32>, vector<8x256xf32>, vector<8x256xf32>, vector<8x256xf32>, vector<8x256xf32>, vector<8x256xf32>, vector<8x256xf32>, vector<8x256xf32> -> vector<72x256xf32>
    %283 = arith.truncf %282 : vector<72x256xf32> to vector<72x256xbf16>
    %c0_124 = arith.constant 0 : index
    %c0_125 = arith.constant 0 : index
    %284 = vector.load %arg13[%c0_124, %c0_125] : memref<8x72xbf16, #tpu.memory_space<vmem>>, vector<8x72xbf16>
    %cst_126 = arith.constant dense<0.000000e+00> : vector<8x256xf32>
    %285 = tpu.matmul %284, %283, %cst_126 {dimension_numbers = #tpu.dot_dimension_numbers<[1], [0], [0], [1], [0, 0, 1, 1], [], []>} : vector<8x72xbf16>, vector<72x256xbf16>, vector<8x256xf32> -> vector<8x256xf32>
    %c0_127 = arith.constant 0 : index
    %c0_128 = arith.constant 0 : index
    %286 = vector.load %arg14[%c0_127, %c0_128] : memref<8x1xf32, #tpu.memory_space<vmem>>, vector<8x1xf32>
    %287 = vector.broadcast %286 : vector<8x1xf32> to vector<8x256xf32>
    %288 = arith.addf %285, %287 : vector<8x256xf32>
    %cst_129 = arith.constant 0.000000e+00 : f32
    %289 = vector.broadcast %cst_129 : f32 to vector<8x256xf32>
    %290 = arith.subf %289, %288 : vector<8x256xf32>
    %291 = math.exp %290 : vector<8x256xf32>
    %cst_130 = arith.constant 1.000000e+00 : f32
    %292 = vector.broadcast %cst_130 : f32 to vector<8x256xf32>
    %293 = arith.addf %292, %291 : vector<8x256xf32>
    %294 = tpu.reciprocal %293 {approx = true} : vector<8x256xf32> -> vector<8x256xf32>
    %295 = arith.mulf %288, %294 : vector<8x256xf32>
    %296 = arith.truncf %295 : vector<8x256xf32> to vector<8x256xbf16>
    %c0_131 = arith.constant 0 : index
    %c0_132 = arith.constant 0 : index
    %297 = vector.load %arg15[%c0_131, %c0_132] : memref<8x8xbf16, #tpu.memory_space<vmem>>, vector<8x8xbf16>
    %cst_133 = arith.constant dense<0.000000e+00> : vector<8x256xf32>
    %298 = tpu.matmul %297, %296, %cst_133 {dimension_numbers = #tpu.dot_dimension_numbers<[1], [0], [0], [1], [0, 0, 1, 1], [], []>} : vector<8x8xbf16>, vector<8x256xbf16>, vector<8x256xf32> -> vector<8x256xf32>
    %c0_134 = arith.constant 0 : index
    %c0_135 = arith.constant 0 : index
    %299 = vector.load %arg16[%c0_134, %c0_135] : memref<8x1xf32, #tpu.memory_space<vmem>>, vector<8x1xf32>
    %300 = vector.broadcast %299 : vector<8x1xf32> to vector<8x256xf32>
    %301 = arith.addf %298, %300 : vector<8x256xf32>
    %cst_136 = arith.constant 0.000000e+00 : f32
    %302 = vector.broadcast %cst_136 : f32 to vector<8x256xf32>
    %303 = arith.subf %302, %301 : vector<8x256xf32>
    %304 = math.exp %303 : vector<8x256xf32>
    %cst_137 = arith.constant 1.000000e+00 : f32
    %305 = vector.broadcast %cst_137 : f32 to vector<8x256xf32>
    %306 = arith.addf %305, %304 : vector<8x256xf32>
    %307 = tpu.reciprocal %306 {approx = true} : vector<8x256xf32> -> vector<8x256xf32>
    %308 = arith.mulf %301, %307 : vector<8x256xf32>
    %309 = tpu.concatenate %87, %225, %72, %102, %73, %308 in 0 : vector<8x256xf32>, vector<8x256xf32>, vector<8x256xf32>, vector<8x256xf32>, vector<8x256xf32>, vector<8x256xf32> -> vector<48x256xf32>
    %310 = arith.truncf %309 : vector<48x256xf32> to vector<48x256xbf16>
    %c0_138 = arith.constant 0 : index
    %c0_139 = arith.constant 0 : index
    %311 = vector.load %arg17[%c0_138, %c0_139] : memref<16x48xbf16, #tpu.memory_space<vmem>>, vector<16x48xbf16>
    %cst_140 = arith.constant dense<0.000000e+00> : vector<16x256xf32>
    %312 = tpu.matmul %311, %310, %cst_140 {dimension_numbers = #tpu.dot_dimension_numbers<[1], [0], [0], [1], [0, 0, 1, 1], [], []>} : vector<16x48xbf16>, vector<48x256xbf16>, vector<16x256xf32> -> vector<16x256xf32>
    %c0_141 = arith.constant 0 : index
    %c0_142 = arith.constant 0 : index
    %313 = vector.load %arg18[%c0_141, %c0_142] : memref<16x1xf32, #tpu.memory_space<vmem>>, vector<16x1xf32>
    %314 = vector.broadcast %313 : vector<16x1xf32> to vector<16x256xf32>
    %315 = arith.addf %312, %314 : vector<16x256xf32>
    %cst_143 = arith.constant 0.000000e+00 : f32
    %316 = vector.broadcast %cst_143 : f32 to vector<16x256xf32>
    %317 = arith.subf %316, %315 : vector<16x256xf32>
    %318 = math.exp %317 : vector<16x256xf32>
    %cst_144 = arith.constant 1.000000e+00 : f32
    %319 = vector.broadcast %cst_144 : f32 to vector<16x256xf32>
    %320 = arith.addf %319, %318 : vector<16x256xf32>
    %321 = tpu.reciprocal %320 {approx = true} : vector<16x256xf32> -> vector<16x256xf32>
    %322 = arith.mulf %315, %321 : vector<16x256xf32>
    %c0_145 = arith.constant 0 : index
    %c0_146 = arith.constant 0 : index
    %c0_147 = arith.constant 0 : index
    %323 = vector.load %arg19[%c0_145, %c0_146, %c0_147] : memref<1x16x256xf32, #tpu.memory_space<vmem>>, vector<1x16x256xf32>
    %324 = vector.shape_cast %323 : vector<1x16x256xf32> to vector<16x256xf32>
    %325 = vector.shape_cast %322 : vector<16x256xf32> to vector<1x16x256xf32>
    tpu.vector_store %arg19[%c0_145, %c0_146, %c0_147], %325 {strides = array<i32>} : memref<1x16x256xf32, #tpu.memory_space<vmem>>, vector<1x16x256xf32>,
    return
  }
  func.func @transform_0(%arg0: i32) -> (i32, i32, i32) {
    %c0_i32 = arith.constant 0 : i32
    %c0_i32_0 = arith.constant 0 : i32
    %c0_i32_1 = arith.constant 0 : i32
    return %arg0, %c0_i32, %c0_i32_0 : i32, i32, i32
  }
  func.func @transform_1(%arg0: i32) -> (i32, i32, i32) {
    %c0_i32 = arith.constant 0 : i32
    %c0_i32_0 = arith.constant 0 : i32
    %c0_i32_1 = arith.constant 0 : i32
    %c0_i32_2 = arith.constant 0 : i32
    return %c0_i32, %c0_i32_0, %c0_i32_1 : i32, i32, i32
  }
  func.func @transform_2(%arg0: i32) -> (i32, i32) {
    %c0_i32 = arith.constant 0 : i32
    %c0_i32_0 = arith.constant 0 : i32
    %c0_i32_1 = arith.constant 0 : i32
    return %c0_i32, %c0_i32_0 : i32, i32
  }
  func.func @transform_3(%arg0: i32) -> (i32, i32) {
    %c0_i32 = arith.constant 0 : i32
    %c0_i32_0 = arith.constant 0 : i32
    %c0_i32_1 = arith.constant 0 : i32
    return %c0_i32, %c0_i32_0 : i32, i32
  }
  func.func @transform_4(%arg0: i32) -> (i32, i32) {
    %c0_i32 = arith.constant 0 : i32
    %c0_i32_0 = arith.constant 0 : i32
    %c0_i32_1 = arith.constant 0 : i32
    return %c0_i32, %c0_i32_0 : i32, i32
  }
  func.func @transform_5(%arg0: i32) -> (i32, i32) {
    %c0_i32 = arith.constant 0 : i32
    %c0_i32_0 = arith.constant 0 : i32
    %c0_i32_1 = arith.constant 0 : i32
    return %c0_i32, %c0_i32_0 : i32, i32
  }
  func.func @transform_6(%arg0: i32) -> (i32, i32, i32) {
    %c0_i32 = arith.constant 0 : i32
    %c0_i32_0 = arith.constant 0 : i32
    %c0_i32_1 = arith.constant 0 : i32
    %c0_i32_2 = arith.constant 0 : i32
    return %c0_i32, %c0_i32_0, %c0_i32_1 : i32, i32, i32
  }
  func.func @transform_7(%arg0: i32) -> (i32, i32) {
    %c0_i32 = arith.constant 0 : i32
    %c0_i32_0 = arith.constant 0 : i32
    %c0_i32_1 = arith.constant 0 : i32
    return %c0_i32, %c0_i32_0 : i32, i32
  }
  func.func @transform_8(%arg0: i32) -> (i32, i32) {
    %c0_i32 = arith.constant 0 : i32
    %c0_i32_0 = arith.constant 0 : i32
    %c0_i32_1 = arith.constant 0 : i32
    return %c0_i32, %c0_i32_0 : i32, i32
  }
  func.func @transform_9(%arg0: i32) -> (i32, i32) {
    %c0_i32 = arith.constant 0 : i32
    %c0_i32_0 = arith.constant 0 : i32
    %c0_i32_1 = arith.constant 0 : i32
    return %c0_i32, %c0_i32_0 : i32, i32
  }
  func.func @transform_10(%arg0: i32) -> (i32, i32) {
    %c0_i32 = arith.constant 0 : i32
    %c0_i32_0 = arith.constant 0 : i32
    %c0_i32_1 = arith.constant 0 : i32
    return %c0_i32, %c0_i32_0 : i32, i32
  }
  func.func @transform_11(%arg0: i32) -> (i32, i32) {
    %c0_i32 = arith.constant 0 : i32
    %c0_i32_0 = arith.constant 0 : i32
    %c0_i32_1 = arith.constant 0 : i32
    return %c0_i32, %c0_i32_0 : i32, i32
  }
  func.func @transform_12(%arg0: i32) -> (i32, i32) {
    %c0_i32 = arith.constant 0 : i32
    %c0_i32_0 = arith.constant 0 : i32
    %c0_i32_1 = arith.constant 0 : i32
    return %c0_i32, %c0_i32_0 : i32, i32
  }
  func.func @transform_13(%arg0: i32) -> (i32, i32) {
    %c0_i32 = arith.constant 0 : i32
    %c0_i32_0 = arith.constant 0 : i32
    %c0_i32_1 = arith.constant 0 : i32
    return %c0_i32, %c0_i32_0 : i32, i32
  }
  func.func @transform_14(%arg0: i32) -> (i32, i32) {
    %c0_i32 = arith.constant 0 : i32
    %c0_i32_0 = arith.constant 0 : i32
    %c0_i32_1 = arith.constant 0 : i32
    return %c0_i32, %c0_i32_0 : i32, i32
  }
  func.func @transform_15(%arg0: i32) -> (i32, i32) {
    %c0_i32 = arith.constant 0 : i32
    %c0_i32_0 = arith.constant 0 : i32
    %c0_i32_1 = arith.constant 0 : i32
    return %c0_i32, %c0_i32_0 : i32, i32
  }
  func.func @transform_16(%arg0: i32) -> (i32, i32) {
    %c0_i32 = arith.constant 0 : i32
    %c0_i32_0 = arith.constant 0 : i32
    %c0_i32_1 = arith.constant 0 : i32
    return %c0_i32, %c0_i32_0 : i32, i32
  }
  func.func @transform_17(%arg0: i32) -> (i32, i32) {
    %c0_i32 = arith.constant 0 : i32
    %c0_i32_0 = arith.constant 0 : i32
    %c0_i32_1 = arith.constant 0 : i32
    return %c0_i32, %c0_i32_0 : i32, i32
  }
  func.func @transform_18(%arg0: i32) -> (i32, i32, i32) {
    %c0_i32 = arith.constant 0 : i32
    %c0_i32_0 = arith.constant 0 : i32
    %c0_i32_1 = arith.constant 0 : i32
    return %arg0, %c0_i32, %c0_i32_0 : i32, i32, i32
  }
}

</mosaic_0001>

<llo_original>
// kernel: famnet_pallas.1
$region0: #{famnet_pallas.1}
  #allocation0 [shape = 'u32[]', space=smem, size = 0x4, offset = 0x4, fixed_abs, tag = 'smem constant byte address 0x4 - core index']
  #allocation1 [shape = 'u32[144,128]{1,0:T(1,128)}', space=vmem, size = 0x12000, scoped, tag = 'internal scratch']
  %s0 = inlined_call_operand.vmem [shape: f32[4,8,256], index: 0, kind: input, shape index: {}]
  %s1 = inlined_call_operand.vmem [shape: f32[9,1,256], index: 1, kind: input, shape index: {}]
  %s2 = inlined_call_operand.vmem [shape: bf16[16,72], index: 2, kind: input, shape index: {}]
  %s3 = inlined_call_operand.vmem [shape: f32[16,1], index: 3, kind: input, shape index: {}]
  %s4 = inlined_call_operand.vmem [shape: bf16[32,16], index: 4, kind: input, shape index: {}]
  %s5 = inlined_call_operand.vmem [shape: f32[32,1], index: 5, kind: input, shape index: {}]
  %s6 = inlined_call_operand.vmem [shape: f32[9,16,1], index: 6, kind: input, shape index: {}]
  %s7 = inlined_call_operand.vmem [shape: f32[16,1], index: 7, kind: input, shape index: {}]
  %s8 = inlined_call_operand.vmem [shape: bf16[8,16], index: 8, kind: input, shape index: {}]
  %s9 = inlined_call_operand.vmem [shape: f32[8,1], index: 9, kind: input, shape index: {}]
  %s10 = inlined_call_operand.vmem [shape: bf16[8,8], index: 10, kind: input, shape index: {}]
  %s11 = inlined_call_operand.vmem [shape: f32[8,1], index: 11, kind: input, shape index: {}]
  %s12 = inlined_call_operand.vmem [shape: bf16[8,72], index: 12, kind: input, shape index: {}]
  %s13 = inlined_call_operand.vmem [shape: f32[8,1], index: 13, kind: input, shape index: {}]
  %s14 = inlined_call_operand.vmem [shape: bf16[8,8], index: 14, kind: input, shape index: {}]
  %s15 = inlined_call_operand.vmem [shape: f32[8,1], index: 15, kind: input, shape index: {}]
  %s16 = inlined_call_operand.vmem [shape: bf16[16,48], index: 16, kind: input, shape index: {}]
  %s17 = inlined_call_operand.vmem [shape: f32[16,1], index: 17, kind: input, shape index: {}]
  %s18 = inlined_call_operand.vmem [shape: f32[4,16,256], index: 18, kind: output, shape index: {}]
  %s19 = sld [smem:[#allocation0]]
  $region105: #{famnet_pallas.1} parent=0
    _
  %s21 = ssub.s32 1, %s19
  %s22 = scalar_select 0, %s21, %s19
  loop: start=0, step=1, limit=6
  $region2: #{famnet_pallas.1} parent=0 // loop_pre_header
    _
  $region3: #{famnet_pallas.1} parent=0 // loop_header
    %s24 = sphi 0, %s28
    %p25 = scmp.ge.s32.totalorder %s24, 6
    %s34 = sphi 0, %s36
    %s37 = sphi 0, %s34
    %s38 = sphi 0, %s37
    %s54 = sphi 0, %s38
    %s58 = sphi 0, %s58
    %s60 = sphi 0, %s58
    %s61 = sphi 0, %s60
    %s75 = sphi 0, %s61
    %s79 = sphi 0, %s79
    %s81 = sphi 0, %s79
    %s82 = sphi 0, %s81
    %s96 = sphi 0, %s82
    %s100 = sphi 0, %s100
    %s102 = sphi 0, %s100
    %s103 = sphi 0, %s102
    %s117 = sphi 0, %s103
    %s121 = sphi 0, %s121
    %s123 = sphi 0, %s121
    %s124 = sphi 0, %s123
    %s138 = sphi 0, %s124
    %s142 = sphi 0, %s142
    %s144 = sphi 0, %s142
    %s145 = sphi 0, %s144
    %s159 = sphi 0, %s145
    %s163 = sphi 0, %s163
    %s165 = sphi 0, %s163
    %s166 = sphi 0, %s165
    %s180 = sphi 0, %s166
    %s184 = sphi 0, %s184
    %s186 = sphi 0, %s184
    %s187 = sphi 0, %s186
    %s201 = sphi 0, %s187
    %s205 = sphi 0, %s205
    %s207 = sphi 0, %s205
    %s208 = sphi 0, %s207
    %s222 = sphi 0, %s208
    %s226 = sphi 0, %s226
    %s228 = sphi 0, %s226
    %s229 = sphi 0, %s228
    %s243 = sphi 0, %s229
    %s247 = sphi 0, %s247
    %s249 = sphi 0, %s247
    %s250 = sphi 0, %s249
    %s264 = sphi 0, %s250
    %s268 = sphi 0, %s268
    %s270 = sphi 0, %s268
    %s271 = sphi 0, %s270
    %s285 = sphi 0, %s271
    %s289 = sphi 0, %s289
    %s291 = sphi 0, %s289
    %s292 = sphi 0, %s291
    %s306 = sphi 0, %s292
    %s310 = sphi 0, %s310
    %s312 = sphi 0, %s310
    %s313 = sphi 0, %s312
    %s327 = sphi 0, %s313
    %s331 = sphi 0, %s331
    %s333 = sphi 0, %s331
    %s334 = sphi 0, %s333
    %s348 = sphi 0, %s334
    %s352 = sphi 0, %s352
    %s354 = sphi 0, %s352
    %s355 = sphi 0, %s354
    %s369 = sphi 0, %s355
    %s373 = sphi 0, %s373
    %s375 = sphi 0, %s373
    %s376 = sphi 0, %s375
    %s390 = sphi 0, %s376
    %s394 = sphi 0, %s394
    %s396 = sphi 0, %s394
    %s397 = sphi 0, %s396
    %s411 = sphi 0, %s397
    %s417 = sphi 0, %s419
    %s420 = sphi 0, %s417
    %s421 = sphi 0, %s420
    %s437 = sphi 0, %s421
  $region4: #{famnet_pallas.1} parent=0 // loop_header_branch
    %27 = sbr.rel (%p25) target = $region8
  $region5: #{famnet_pallas.1} parent=0 // loop_body
    %s29 = ssub.s32 %s24, 1
    %s30 = ssub.s32 %s24, 2
    %s31 = sadd.s32 %s24, 1
    %s32 = ssub.s32 %s24, %s31
    %p33 = scmp.eq.s32.totalorder %s32, 0
    %s35 = sadd.s32 %s34, 1
    %s36 = scalar_select %p33, %s34, %s35
    %p39 = pneg %p33
    %p40 = scmp.eq.s32.totalorder %s24, 3
    %p41 = por %p39, %p40
    %p42 = scmp.ne.s32.totalorder %s34, %s37
    %p43 = scmp.eq.s32.totalorder %s24, 0
    %p44 = por %p42, %p43
    %p45 = scmp.ne.s32.totalorder %s34, %s37
    %p46 = scmp.eq.s32.totalorder %s29, 3
    %p47 = por %p45, %p46
    %p48 = scmp.ne.s32.totalorder %s37, %s38
    %p49 = scmp.eq.s32.totalorder %s29, 0
    %p50 = por %p48, %p49
    %p51 = scmp.ne.s32.totalorder %s37, %s38
    %p52 = scmp.eq.s32.totalorder %s30, 3
    %p53 = por %p51, %p52
    %p55 = scmp.ne.s32.totalorder %s38, %s54
    %p56 = scmp.eq.s32.totalorder %s30, 0
    %p57 = por %p55, %p56
    %s59 = sadd.s32 %s58, 1
    %p62 = scmp.eq.s32.totalorder %s24, 3
    %p63 = scmp.ne.s32.totalorder %s58, %s60
    %p64 = scmp.eq.s32.totalorder %s24, 0
    %p65 = por %p63, %p64
    %p66 = scmp.ne.s32.totalorder %s58, %s60
    %p67 = scmp.eq.s32.totalorder %s29, 3
    %p68 = por %p66, %p67
    %p69 = scmp.ne.s32.totalorder %s60, %s61
    %p70 = scmp.eq.s32.totalorder %s29, 0
    %p71 = por %p69, %p70
    %p72 = scmp.ne.s32.totalorder %s60, %s61
    %p73 = scmp.eq.s32.totalorder %s30, 3
    %p74 = por %p72, %p73
    %p76 = scmp.ne.s32.totalorder %s61, %s75
    %p77 = scmp.eq.s32.totalorder %s30, 0
    %p78 = por %p76, %p77
    %s80 = sadd.s32 %s79, 1
    %p83 = scmp.eq.s32.totalorder %s24, 3
    %p84 = scmp.ne.s32.totalorder %s79, %s81
    %p85 = scmp.eq.s32.totalorder %s24, 0
    %p86 = por %p84, %p85
    %p87 = scmp.ne.s32.totalorder %s79, %s81
    %p88 = scmp.eq.s32.totalorder %s29, 3
    %p89 = por %p87, %p88
    %p90 = scmp.ne.s32.totalorder %s81, %s82
    %p91 = scmp.eq.s32.totalorder %s29, 0
    %p92 = por %p90, %p91
    %p93 = scmp.ne.s32.totalorder %s81, %s82
    %p94 = scmp.eq.s32.totalorder %s30, 3
    %p95 = por %p93, %p94
    %p97 = scmp.ne.s32.totalorder %s82, %s96
    %p98 = scmp.eq.s32.totalorder %s30, 0
    %p99 = por %p97, %p98
    %s101 = sadd.s32 %s100, 1
    %p104 = scmp.eq.s32.totalorder %s24, 3
    %p105 = scmp.ne.s32.totalorder %s100, %s102
    %p106 = scmp.eq.s32.totalorder %s24, 0
    %p107 = por %p105, %p106
    %p108 = scmp.ne.s32.totalorder %s100, %s102
    %p109 = scmp.eq.s32.totalorder %s29, 3
    %p110 = por %p108, %p109
    %p111 = scmp.ne.s32.totalorder %s102, %s103
    %p112 = scmp.eq.s32.totalorder %s29, 0
    %p113 = por %p111, %p112
    %p114 = scmp.ne.s32.totalorder %s102, %s103
    %p115 = scmp.eq.s32.totalorder %s30, 3
    %p116 = por %p114, %p115
    %p118 = scmp.ne.s32.totalorder %s103, %s117
    %p119 = scmp.eq.s32.totalorder %s30, 0
    %p120 = por %p118, %p119
    %s122 = sadd.s32 %s121, 1
    %p125 = scmp.eq.s32.totalorder %s24, 3
    %p126 = scmp.ne.s32.totalorder %s121, %s123
    %p127 = scmp.eq.s32.totalorder %s24, 0
    %p128 = por %p126, %p127
    %p129 = scmp.ne.s32.totalorder %s121, %s123
    %p130 = scmp.eq.s32.totalorder %s29, 3
    %p131 = por %p129, %p130
    %p132 = scmp.ne.s32.totalorder %s123, %s124
    %p133 = scmp.eq.s32.totalorder %s29, 0
    %p134 = por %p132, %p133
    %p135 = scmp.ne.s32.totalorder %s123, %s124
    %p136 = scmp.eq.s32.totalorder %s30, 3
    %p137 = por %p135, %p136
    %p139 = scmp.ne.s32.totalorder %s124, %s138
    %p140 = scmp.eq.s32.totalorder %s30, 0
    %p141 = por %p139, %p140
    %s143 = sadd.s32 %s142, 1
    %p146 = scmp.eq.s32.totalorder %s24, 3
    %p147 = scmp.ne.s32.totalorder %s142, %s144
    %p148 = scmp.eq.s32.totalorder %s24, 0
    %p149 = por %p147, %p148
    %p150 = scmp.ne.s32.totalorder %s142, %s144
    %p151 = scmp.eq.s32.totalorder %s29, 3
    %p152 = por %p150, %p151
    %p153 = scmp.ne.s32.totalorder %s144, %s145
    %p154 = scmp.eq.s32.totalorder %s29, 0
    %p155 = por %p153, %p154
    %p156 = scmp.ne.s32.totalorder %s144, %s145
    %p157 = scmp.eq.s32.totalorder %s30, 3
    %p158 = por %p156, %p157
    %p160 = scmp.ne.s32.totalorder %s145, %s159
    %p161 = scmp.eq.s32.totalorder %s30, 0
    %p162 = por %p160, %p161
    %s164 = sadd.s32 %s163, 1
    %p167 = scmp.eq.s32.totalorder %s24, 3
    %p168 = scmp.ne.s32.totalorder %s163, %s165
    %p169 = scmp.eq.s32.totalorder %s24, 0
    %p170 = por %p168, %p169
    %p171 = scmp.ne.s32.totalorder %s163, %s165
    %p172 = scmp.eq.s32.totalorder %s29, 3
    %p173 = por %p171, %p172
    %p174 = scmp.ne.s32.totalorder %s165, %s166
    %p175 = scmp.eq.s32.totalorder %s29, 0
    %p176 = por %p174, %p175
    %p177 = scmp.ne.s32.totalorder %s165, %s166
    %p178 = scmp.eq.s32.totalorder %s30, 3
    %p179 = por %p177, %p178
    %p181 = scmp.ne.s32.totalorder %s166, %s180
    %p182 = scmp.eq.s32.totalorder %s30, 0
    %p183 = por %p181, %p182
    %s185 = sadd.s32 %s184, 1
    %p188 = scmp.eq.s32.totalorder %s24, 3
    %p189 = scmp.ne.s32.totalorder %s184, %s186
    %p190 = scmp.eq.s32.totalorder %s24, 0
    %p191 = por %p189, %p190
    %p192 = scmp.ne.s32.totalorder %s184, %s186
    %p193 = scmp.eq.s32.totalorder %s29, 3
    %p194 = por %p192, %p193
    %p195 = scmp.ne.s32.totalorder %s186, %s187
    %p196 = scmp.eq.s32.totalorder %s29, 0
    %p197 = por %p195, %p196
    %p198 = scmp.ne.s32.totalorder %s186, %s187
    %p199 = scmp.eq.s32.totalorder %s30, 3
    %p200 = por %p198, %p199
    %p202 = scmp.ne.s32.totalorder %s187, %s201
    %p203 = scmp.eq.s32.totalorder %s30, 0
    %p204 = por %p202, %p203
    %s206 = sadd.s32 %s205, 1
    %p209 = scmp.eq.s32.totalorder %s24, 3
    %p210 = scmp.ne.s32.totalorder %s205, %s207
    %p211 = scmp.eq.s32.totalorder %s24, 0
    %p212 = por %p210, %p211
    %p213 = scmp.ne.s32.totalorder %s205, %s207
    %p214 = scmp.eq.s32.totalorder %s29, 3
    %p215 = por %p213, %p214
    %p216 = scmp.ne.s32.totalorder %s207, %s208
    %p217 = scmp.eq.s32.totalorder %s29, 0
    %p218 = por %p216, %p217
    %p219 = scmp.ne.s32.totalorder %s207, %s208
    %p220 = scmp.eq.s32.totalorder %s30, 3
    %p221 = por %p219, %p220
    %p223 = scmp.ne.s32.totalorder %s208, %s222
    %p224 = scmp.eq.s32.totalorder %s30, 0
    %p225 = por %p223, %p224
    %s227 = sadd.s32 %s226, 1
    %p230 = scmp.eq.s32.totalorder %s24, 3
    %p231 = scmp.ne.s32.totalorder %s226, %s228
    %p232 = scmp.eq.s32.totalorder %s24, 0
    %p233 = por %p231, %p232
    %p234 = scmp.ne.s32.totalorder %s226, %s228
    %p235 = scmp.eq.s32.totalorder %s29, 3
    %p236 = por %p234, %p235
    %p237 = scmp.ne.s32.totalorder %s228, %s229
    %p238 = scmp.eq.s32.totalorder %s29, 0
    %p239 = por %p237, %p238
    %p240 = scmp.ne.s32.totalorder %s228, %s229
    %p241 = scmp.eq.s32.totalorder %s30, 3
    %p242 = por %p240, %p241
    %p244 = scmp.ne.s32.totalorder %s229, %s243
    %p245 = scmp.eq.s32.totalorder %s30, 0
    %p246 = por %p244, %p245
    %s248 = sadd.s32 %s247, 1
    %p251 = scmp.eq.s32.totalorder %s24, 3
    %p252 = scmp.ne.s32.totalorder %s247, %s249
    %p253 = scmp.eq.s32.totalorder %s24, 0
    %p254 = por %p252, %p253
    %p255 = scmp.ne.s32.totalorder %s247, %s249
    %p256 = scmp.eq.s32.totalorder %s29, 3
    %p257 = por %p255, %p256
    %p258 = scmp.ne.s32.totalorder %s249, %s250
    %p259 = scmp.eq.s32.totalorder %s29, 0
    %p260 = por %p258, %p259
    %p261 = scmp.ne.s32.totalorder %s249, %s250
    %p262 = scmp.eq.s32.totalorder %s30, 3
    %p263 = por %p261, %p262
    %p265 = scmp.ne.s32.totalorder %s250, %s264
    %p266 = scmp.eq.s32.totalorder %s30, 0
    %p267 = por %p265, %p266
    %s269 = sadd.s32 %s268, 1
    %p272 = scmp.eq.s32.totalorder %s24, 3
    %p273 = scmp.ne.s32.totalorder %s268, %s270
    %p274 = scmp.eq.s32.totalorder %s24, 0
    %p275 = por %p273, %p274
    %p276 = scmp.ne.s32.totalorder %s268, %s270
    %p277 = scmp.eq.s32.totalorder %s29, 3
    %p278 = por %p276, %p277
    %p279 = scmp.ne.s32.totalorder %s270, %s271
    %p280 = scmp.eq.s32.totalorder %s29, 0
    %p281 = por %p279, %p280
    %p282 = scmp.ne.s32.totalorder %s270, %s271
    %p283 = scmp.eq.s32.totalorder %s30, 3
    %p284 = por %p282, %p283
    %p286 = scmp.ne.s32.totalorder %s271, %s285
    %p287 = scmp.eq.s32.totalorder %s30, 0
    %p288 = por %p286, %p287
    %s290 = sadd.s32 %s289, 1
    %p293 = scmp.eq.s32.totalorder %s24, 3
    %p294 = scmp.ne.s32.totalorder %s289, %s291
    %p295 = scmp.eq.s32.totalorder %s24, 0
    %p296 = por %p294, %p295
    %p297 = scmp.ne.s32.totalorder %s289, %s291
    %p298 = scmp.eq.s32.totalorder %s29, 3
    %p299 = por %p297, %p298
    %p300 = scmp.ne.s32.totalorder %s291, %s292
    %p301 = scmp.eq.s32.totalorder %s29, 0
    %p302 = por %p300, %p301
    %p303 = scmp.ne.s32.totalorder %s291, %s292
    %p304 = scmp.eq.s32.totalorder %s30, 3
    %p305 = por %p303, %p304
    %p307 = scmp.ne.s32.totalorder %s292, %s306
    %p308 = scmp.eq.s32.totalorder %s30, 0
    %p309 = por %p307, %p308
    %s311 = sadd.s32 %s310, 1
    %p314 = scmp.eq.s32.totalorder %s24, 3
    %p315 = scmp.ne.s32.totalorder %s310, %s312
    %p316 = scmp.eq.s32.totalorder %s24, 0
    %p317 = por %p315, %p316
    %p318 = scmp.ne.s32.totalorder %s310, %s312
    %p319 = scmp.eq.s32.totalorder %s29, 3
    %p320 = por %p318, %p319
    %p321 = scmp.ne.s32.totalorder %s312, %s313
    %p322 = scmp.eq.s32.totalorder %s29, 0
    %p323 = por %p321, %p322
    %p324 = scmp.ne.s32.totalorder %s312, %s313
    %p325 = scmp.eq.s32.totalorder %s30, 3
    %p326 = por %p324, %p325
    %p328 = scmp.ne.s32.totalorder %s313, %s327
    %p329 = scmp.eq.s32.totalorder %s30, 0
    %p330 = por %p328, %p329
    %s332 = sadd.s32 %s331, 1
    %p335 = scmp.eq.s32.totalorder %s24, 3
    %p336 = scmp.ne.s32.totalorder %s331, %s333
    %p337 = scmp.eq.s32.totalorder %s24, 0
    %p338 = por %p336, %p337
    %p339 = scmp.ne.s32.totalorder %s331, %s333
    %p340 = scmp.eq.s32.totalorder %s29, 3
    %p341 = por %p339, %p340
    %p342 = scmp.ne.s32.totalorder %s333, %s334
    %p343 = scmp.eq.s32.totalorder %s29, 0
    %p344 = por %p342, %p343
    %p345 = scmp.ne.s32.totalorder %s333, %s334
    %p346 = scmp.eq.s32.totalorder %s30, 3
    %p347 = por %p345, %p346
    %p349 = scmp.ne.s32.totalorder %s334, %s348
    %p350 = scmp.eq.s32.totalorder %s30, 0
    %p351 = por %p349, %p350
    %s353 = sadd.s32 %s352, 1
    %p356 = scmp.eq.s32.totalorder %s24, 3
    %p357 = scmp.ne.s32.totalorder %s352, %s354
    %p358 = scmp.eq.s32.totalorder %s24, 0
    %p359 = por %p357, %p358
    %p360 = scmp.ne.s32.totalorder %s352, %s354
    %p361 = scmp.eq.s32.totalorder %s29, 3
    %p362 = por %p360, %p361
    %p363 = scmp.ne.s32.totalorder %s354, %s355
    %p364 = scmp.eq.s32.totalorder %s29, 0
    %p365 = por %p363, %p364
    %p366 = scmp.ne.s32.totalorder %s354, %s355
    %p367 = scmp.eq.s32.totalorder %s30, 3
    %p368 = por %p366, %p367
    %p370 = scmp.ne.s32.totalorder %s355, %s369
    %p371 = scmp.eq.s32.totalorder %s30, 0
    %p372 = por %p370, %p371
    %s374 = sadd.s32 %s373, 1
    %p377 = scmp.eq.s32.totalorder %s24, 3
    %p378 = scmp.ne.s32.totalorder %s373, %s375
    %p379 = scmp.eq.s32.totalorder %s24, 0
    %p380 = por %p378, %p379
    %p381 = scmp.ne.s32.totalorder %s373, %s375
    %p382 = scmp.eq.s32.totalorder %s29, 3
    %p383 = por %p381, %p382
    %p384 = scmp.ne.s32.totalorder %s375, %s376
    %p385 = scmp.eq.s32.totalorder %s29, 0
    %p386 = por %p384, %p385
    %p387 = scmp.ne.s32.totalorder %s375, %s376
    %p388 = scmp.eq.s32.totalorder %s30, 3
    %p389 = por %p387, %p388
    %p391 = scmp.ne.s32.totalorder %s376, %s390
    %p392 = scmp.eq.s32.totalorder %s30, 0
    %p393 = por %p391, %p392
    %s395 = sadd.s32 %s394, 1
    %p398 = scmp.eq.s32.totalorder %s24, 3
    %p399 = scmp.ne.s32.totalorder %s394, %s396
    %p400 = scmp.eq.s32.totalorder %s24, 0
    %p401 = por %p399, %p400
    %p402 = scmp.ne.s32.totalorder %s394, %s396
    %p403 = scmp.eq.s32.totalorder %s29, 3
    %p404 = por %p402, %p403
    %p405 = scmp.ne.s32.totalorder %s396, %s397
    %p406 = scmp.eq.s32.totalorder %s29, 0
    %p407 = por %p405, %p406
    %p408 = scmp.ne.s32.totalorder %s396, %s397
    %p409 = scmp.eq.s32.totalorder %s30, 3
    %p410 = por %p408, %p409
    %p412 = scmp.ne.s32.totalorder %s397, %s411
    %p413 = scmp.eq.s32.totalorder %s30, 0
    %p414 = por %p412, %p413
    %s415 = ssub.s32 %s24, %s31
    %p416 = scmp.eq.s32.totalorder %s415, 0
    %s418 = sadd.s32 %s417, 1
    %s419 = scalar_select %p416, %s417, %s418
    %p422 = pneg %p416
    %p423 = scmp.eq.s32.totalorder %s24, 3
    %p424 = por %p422, %p423
    %p425 = scmp.ne.s32.totalorder %s417, %s420
    %p426 = scmp.eq.s32.totalorder %s24, 0
    %p427 = por %p425, %p426
    %p428 = scmp.ne.s32.totalorder %s417, %s420
    %p429 = scmp.eq.s32.totalorder %s29, 3
    %p430 = por %p428, %p429
    %p431 = scmp.ne.s32.totalorder %s420, %s421
    %p432 = scmp.eq.s32.totalorder %s29, 0
    %p433 = por %p431, %p432
    %p434 = scmp.ne.s32.totalorder %s420, %s421
    %p435 = scmp.eq.s32.totalorder %s30, 3
    %p436 = por %p434, %p435
    %p438 = scmp.ne.s32.totalorder %s421, %s437
    %p439 = scmp.eq.s32.totalorder %s30, 0
    %p440 = por %p438, %p439
    %p441 = scmp.le.s32.totalorder 1, %s24
    %p442 = scmp.lt.s32.totalorder %s24, 5
    %p443 = pnand %p441, %p442
    %p444 = pneg %p443
    // Predicated region
    $region9: #{famnet_pallas.1} parent=5 // pred_check
      _
    $region10: #{famnet_pallas.1} parent=5 // pred_check_branch
      %446 = sbr.rel (%p443) target = $region12
    $region11: #{famnet_pallas.1} parent=5 // pred_region
      %s447 = ssub.s32 %s24, 1
      // Predicated region
      $region13: #{famnet_pallas.1} parent=11 // pred_check
        %p448 = pneg %p71
      $region14: #{famnet_pallas.1} parent=11 // pred_check_branch
        %450 = sbr.rel (%p448) target = $region16
      $region15: #{famnet_pallas.1} parent=11 // pred_region
        _
      $region16: #{famnet_pallas.1} parent=11 // pred_fallthru
        _
      // Predicated region
      $region17: #{famnet_pallas.1} parent=11 // pred_check
        %p451 = pneg %p92
      $region18: #{famnet_pallas.1} parent=11 // pred_check_branch
        %453 = sbr.rel (%p451) target = $region20
      $region19: #{famnet_pallas.1} parent=11 // pred_region
        _
      $region20: #{famnet_pallas.1} parent=11 // pred_fallthru
        _
      // Predicated region
      $region21: #{famnet_pallas.1} parent=11 // pred_check
        %p454 = pneg %p113
      $region22: #{famnet_pallas.1} parent=11 // pred_check_branch
        %456 = sbr.rel (%p454) target = $region24
      $region23: #{famnet_pallas.1} parent=11 // pred_region
        _
      $region24: #{famnet_pallas.1} parent=11 // pred_fallthru
        _
      // Predicated region
      $region25: #{famnet_pallas.1} parent=11 // pred_check
        %p457 = pneg %p134
      $region26: #{famnet_pallas.1} parent=11 // pred_check_branch
        %459 = sbr.rel (%p457) target = $region28
      $region27: #{famnet_pallas.1} parent=11 // pred_region
        _
      $region28: #{famnet_pallas.1} parent=11 // pred_fallthru
        _
      // Predicated region
      $region29: #{famnet_pallas.1} parent=11 // pred_check
        %p460 = pneg %p155
      $region30: #{famnet_pallas.1} parent=11 // pred_check_branch
        %462 = sbr.rel (%p460) target = $region32
      $region31: #{famnet_pallas.1} parent=11 // pred_region
        _
      $region32: #{famnet_pallas.1} parent=11 // pred_fallthru
        _
      // Predicated region
      $region33: #{famnet_pallas.1} parent=11 // pred_check
        %p463 = pneg %p176
      $region34: #{famnet_pallas.1} parent=11 // pred_check_branch
        %465 = sbr.rel (%p463) target = $region36
      $region35: #{famnet_pallas.1} parent=11 // pred_region
        _
      $region36: #{famnet_pallas.1} parent=11 // pred_fallthru
        _
      // Predicated region
      $region37: #{famnet_pallas.1} parent=11 // pred_check
        %p466 = pneg %p197
      $region38: #{famnet_pallas.1} parent=11 // pred_check_branch
        %468 = sbr.rel (%p466) target = $region40
      $region39: #{famnet_pallas.1} parent=11 // pred_region
        _
      $region40: #{famnet_pallas.1} parent=11 // pred_fallthru
        _
      // Predicated region
      $region41: #{famnet_pallas.1} parent=11 // pred_check
        %p469 = pneg %p218
      $region42: #{famnet_pallas.1} parent=11 // pred_check_branch
        %471 = sbr.rel (%p469) target = $region44
      $region43: #{famnet_pallas.1} parent=11 // pred_region
        _
      $region44: #{famnet_pallas.1} parent=11 // pred_fallthru
        _
      // Predicated region
      $region45: #{famnet_pallas.1} parent=11 // pred_check
        %p472 = pneg %p239
      $region46: #{famnet_pallas.1} parent=11 // pred_check_branch
        %474 = sbr.rel (%p472) target = $region48
      $region47: #{famnet_pallas.1} parent=11 // pred_region
        _
      $region48: #{famnet_pallas.1} parent=11 // pred_fallthru
        _
      // Predicated region
      $region49: #{famnet_pallas.1} parent=11 // pred_check
        %p475 = pneg %p260
      $region50: #{famnet_pallas.1} parent=11 // pred_check_branch
        %477 = sbr.rel (%p475) target = $region52
      $region51: #{famnet_pallas.1} parent=11 // pred_region
        _
      $region52: #{famnet_pallas.1} parent=11 // pred_fallthru
        _
      // Predicated region
      $region53: #{famnet_pallas.1} parent=11 // pred_check
        %p478 = pneg %p281
      $region54: #{famnet_pallas.1} parent=11 // pred_check_branch
        %480 = sbr.rel (%p478) target = $region56
      $region55: #{famnet_pallas.1} parent=11 // pred_region
        _
      $region56: #{famnet_pallas.1} parent=11 // pred_fallthru
        _
      // Predicated region
      $region57: #{famnet_pallas.1} parent=11 // pred_check
        %p481 = pneg %p302
      $region58: #{famnet_pallas.1} parent=11 // pred_check_branch
        %483 = sbr.rel (%p481) target = $region60
      $region59: #{famnet_pallas.1} parent=11 // pred_region
        _
      $region60: #{famnet_pallas.1} parent=11 // pred_fallthru
        _
      // Predicated region
      $region61: #{famnet_pallas.1} parent=11 // pred_check
        %p484 = pneg %p323
      $region62: #{famnet_pallas.1} parent=11 // pred_check_branch
        %486 = sbr.rel (%p484) target = $region64
      $region63: #{famnet_pallas.1} parent=11 // pred_region
        _
      $region64: #{famnet_pallas.1} parent=11 // pred_fallthru
        _
      // Predicated region
      $region65: #{famnet_pallas.1} parent=11 // pred_check
        %p487 = pneg %p344
      $region66: #{famnet_pallas.1} parent=11 // pred_check_branch
        %489 = sbr.rel (%p487) target = $region68
      $region67: #{famnet_pallas.1} parent=11 // pred_region
        _
      $region68: #{famnet_pallas.1} parent=11 // pred_fallthru
        _
      // Predicated region
      $region69: #{famnet_pallas.1} parent=11 // pred_check
        %p490 = pneg %p365
      $region70: #{famnet_pallas.1} parent=11 // pred_check_branch
        %492 = sbr.rel (%p490) target = $region72
      $region71: #{famnet_pallas.1} parent=11 // pred_region
        _
      $region72: #{famnet_pallas.1} parent=11 // pred_fallthru
        _
      // Predicated region
      $region73: #{famnet_pallas.1} parent=11 // pred_check
        %p493 = pneg %p386
      $region74: #{famnet_pallas.1} parent=11 // pred_check_branch
        %495 = sbr.rel (%p493) target = $region76
      $region75: #{famnet_pallas.1} parent=11 // pred_region
        _
      $region76: #{famnet_pallas.1} parent=11 // pred_fallthru
        _
      // Predicated region
      $region77: #{famnet_pallas.1} parent=11 // pred_check
        %p496 = pneg %p407
      $region78: #{famnet_pallas.1} parent=11 // pred_check_branch
        %498 = sbr.rel (%p496) target = $region80
      $region79: #{famnet_pallas.1} parent=11 // pred_region
        _
      $region80: #{famnet_pallas.1} parent=11 // pred_fallthru
        _
    $region12: #{famnet_pallas.1} parent=5 // pred_fallthru
      _
    %p499 = scmp.lt.s32.totalorder %s24, 4
    // Predicated region
    $region81: #{famnet_pallas.1} parent=5 // pred_check
      %p500 = pneg %p499
    $region82: #{famnet_pallas.1} parent=5 // pred_check_branch
      %502 = sbr.rel (%p500) target = $region84
    $region83: #{famnet_pallas.1} parent=5 // pred_region
      // Predicated region
      $region85: #{famnet_pallas.1} parent=83 // pred_check
        %p503 = pneg %p44
      $region86: #{famnet_pallas.1} parent=83 // pred_check_branch
        %505 = sbr.rel (%p503) target = $region88
      $region87: #{famnet_pallas.1} parent=83 // pred_region
        %p506 = scmp.lt.s32.totalorder %s24, 3
        %s507 = scalar_select %p506, %s24, 3
        %s508 = smul.addr %s507, 2
        %s509 = smul.addr %s508, 8
        %s510 = scalar_lea.vmem %s0, %s509
      $region88: #{famnet_pallas.1} parent=83 // pred_fallthru
        _
    $region84: #{famnet_pallas.1} parent=5 // pred_fallthru
      _
    %p511 = scmp.le.s32.totalorder 1, %s24
    %p512 = scmp.lt.s32.totalorder %s24, 5
    %p513 = pnand %p511, %p512
    %p514 = pneg %p513
    // Predicated region
    $region89: #{famnet_pallas.1} parent=5 // pred_check
      _
    $region90: #{famnet_pallas.1} parent=5 // pred_check_branch
      %516 = sbr.rel (%p513) target = $region92
    $region91: #{famnet_pallas.1} parent=5 // pred_region
      %s517 = ssub.s32 %s24, 1
      %p518 = scmp.lt.s32.totalorder %s29, 3
      %s519 = scalar_select %p518, %s29, 3
      %s520 = smul.addr %s519, 2
      %s521 = smul.addr %s520, 8
      %s522 = scalar_lea.vmem %s0, %s521
      %p523 = pneg %p50
      %p524 = pneg %p47
      %p525 = pneg %p71
      %p526 = pneg %p68
      %p527 = pneg %p92
      %p528 = pneg %p89
      %p529 = pneg %p113
      %p530 = pneg %p110
      %p531 = pneg %p134
      %p532 = pneg %p131
      %p533 = pneg %p155
      %p534 = pneg %p152
      %p535 = pneg %p176
      %p536 = pneg %p173
      %p537 = pneg %p197
      %p538 = pneg %p194
      %p539 = pneg %p218
      %p540 = pneg %p215
      %p541 = pneg %p239
      %p542 = pneg %p236
      %p543 = pneg %p260
      %p544 = pneg %p257
      %p545 = pneg %p281
      %p546 = pneg %p278
      %p547 = pneg %p302
      %p548 = pneg %p299
      %p549 = pneg %p323
      %p550 = pneg %p320
      %p551 = pneg %p344
      %p552 = pneg %p341
      %p553 = pneg %p365
      %p554 = pneg %p362
      %p555 = pneg %p386
      %p556 = pneg %p383
      %p557 = pneg %p407
      %p558 = pneg %p404
      %p559 = pneg %p433
      %p560 = pneg %p430
      %p561 = scmp.lt.s32.totalorder %s29, 3
      %s562 = scalar_select %p561, %s29, 3
      %s563 = smul.addr %s562, 4
      %s564 = smul.addr %s563, 8
      %s565 = scalar_lea.vmem %s18, %s564
      %p566 = scmp.lt.s32.totalorder %s29, 3
      %s567 = scalar_select %p566, %s29, 3
      %s568 = smul.addr %s567, 2
      %s569 = smul.addr %s568, 8
      %s570 = scalar_lea.vmem %s0, %s569
      %p571 = scmp.lt.s32.totalorder %s29, 3
      %s572 = scalar_select %p571, %s29, 3
      %s573 = smul.addr %s572, 4
      %s574 = smul.addr %s573, 8
      %s575 = scalar_lea.vmem %s18, %s574
      %v577 = vld [vmem:[%s570] sm:$0xff]
      %v578 = vld [vmem:[%s570 + $0x8] sm:$0xff]
      %580 = vrot.lane.b32.xlu0 %v578, 17
      %v581 = vpop.permute.xlu0 %580
      %584 = vrot.lane.b32.xlu0 %v577, 17
      %v585 = vpop.permute.xlu0 %584
      %vm586 = vcmask 138240
      %v587 = vsel %vm586, %v585, %v581
      %v590 = vsel %vm586, %v581, %v585
      %v591 = vld [vmem:[%s1] sm:$0x3]
      %v593 = vlaneseq
      %v594 = vshrl.u32 %v593, 7
      %v595 = vsub.s32 0, %v594
      %v596 = vrot.slane %v591, %v595
      %v597 = vlaneseq
      %v598 = vshrl.u32 %v597, 7
      %v599 = vsub.s32 1, %v598
      %v600 = vrot.slane %v591, %v599
      %v603 = vmul.f32 %v590, %v596
      %v604 = vmul.f32 %v587, %v600
      %605 = vrot.lane.b32.xlu0 %v578, 16
      %v606 = vpop.permute.xlu0 %605
      %608 = vrot.lane.b32.xlu0 %v577, 16
      %v609 = vpop.permute.xlu0 %608
      %vm610 = vcmask 130048
      %v611 = vsel %vm610, %v609, %v606
      %v614 = vsel %vm610, %v606, %v609
      %s615 = scalar_lea.vmem %s1, 2
      %v616 = vld [vmem:[%s615] sm:$0x3]
      %v618 = vlaneseq
      %v619 = vshrl.u32 %v618, 7
      %v620 = vsub.s32 0, %v619
      %v621 = vrot.slane %v616, %v620
      %v622 = vlaneseq
      %v623 = vshrl.u32 %v622, 7
      %v624 = vsub.s32 1, %v623
      %v625 = vrot.slane %v616, %v624
      %v628 = vmul.f32 %v614, %v621
      %v629 = vmul.f32 %v611, %v625
      %630 = vrot.lane.b32.xlu0 %v578, 15
      %v631 = vpop.permute.xlu0 %630
      %633 = vrot.lane.b32.xlu0 %v577, 15
      %v634 = vpop.permute.xlu0 %633
      %vm635 = vcmask 121856
      %v636 = vsel %vm635, %v634, %v631
      %v639 = vsel %vm635, %v631, %v634
      %s640 = scalar_lea.vmem %s1, 4
      %v641 = vld [vmem:[%s640] sm:$0x3]
      %v643 = vlaneseq
      %v644 = vshrl.u32 %v643, 7
      %v645 = vsub.s32 0, %v644
      %v646 = vrot.slane %v641, %v645
      %v647 = vlaneseq
      %v648 = vshrl.u32 %v647, 7
      %v649 = vsub.s32 1, %v648
      %v650 = vrot.slane %v641, %v649
      %v653 = vmul.f32 %v639, %v646
      %v654 = vmul.f32 %v636, %v650
      %655 = vrot.lane.b32.xlu0 %v578, 1
      %v656 = vpop.permute.xlu0 %655
      %658 = vrot.lane.b32.xlu0 %v577, 1
      %v659 = vpop.permute.xlu0 %658
      %vm660 = vcmask 7168
      %v661 = vsel %vm660, %v659, %v656
      %v664 = vsel %vm660, %v656, %v659
      %s665 = scalar_lea.vmem %s1, 6
      %v666 = vld [vmem:[%s665] sm:$0x3]
      %v668 = vlaneseq
      %v669 = vshrl.u32 %v668, 7
      %v670 = vsub.s32 0, %v669
      %v671 = vrot.slane %v666, %v670
      %v672 = vlaneseq
      %v673 = vshrl.u32 %v672, 7
      %v674 = vsub.s32 1, %v673
      %v675 = vrot.slane %v666, %v674
      %v678 = vmul.f32 %v664, %v671
      %v679 = vmul.f32 %v661, %v675
      %680 = vrot.lane.b32.xlu0 %v577, 127
      %v681 = vpop.permute.xlu0 %680
      %682 = vrot.lane.b32.xlu0 %v578, 127
      %v683 = vpop.permute.xlu0 %682
      %vm684 = vcmask 1039360
      %v685 = vsel %vm684, %v681, %v683
      %v689 = vsel %vm684, %v683, %v681
      %s690 = scalar_lea.vmem %s1, 10
      %v691 = vld [vmem:[%s690] sm:$0x3]
      %v693 = vlaneseq
      %v694 = vshrl.u32 %v693, 7
      %v695 = vsub.s32 0, %v694
      %v696 = vrot.slane %v691, %v695
      %v697 = vlaneseq
      %v698 = vshrl.u32 %v697, 7
      %v699 = vsub.s32 1, %v698
      %v700 = vrot.slane %v691, %v699
      %v703 = vmul.f32 %v685, %v696
      %v704 = vmul.f32 %v689, %v700
      %705 = vrot.lane.b32.xlu0 %v577, 113
      %v706 = vpop.permute.xlu0 %705
      %707 = vrot.lane.b32.xlu0 %v578, 113
      %v708 = vpop.permute.xlu0 %707
      %vm709 = vcmask 924672
      %v710 = vsel %vm709, %v706, %v708
      %v714 = vsel %vm709, %v708, %v706
      %s715 = scalar_lea.vmem %s1, 12
      %v716 = vld [vmem:[%s715] sm:$0x3]
      %v718 = vlaneseq
      %v719 = vshrl.u32 %v718, 7
      %v720 = vsub.s32 0, %v719
      %v721 = vrot.slane %v716, %v720
      %v722 = vlaneseq
      %v723 = vshrl.u32 %v722, 7
      %v724 = vsub.s32 1, %v723
      %v725 = vrot.slane %v716, %v724
      %v728 = vmul.f32 %v710, %v721
      %v729 = vmul.f32 %v714, %v725
      %730 = vrot.lane.b32.xlu0 %v577, 112
      %v731 = vpop.permute.xlu0 %730
      %732 = vrot.lane.b32.xlu0 %v578, 112
      %v733 = vpop.permute.xlu0 %732
      %vm734 = vcmask 916480
      %v735 = vsel %vm734, %v731, %v733
      %v739 = vsel %vm734, %v733, %v731
      %s740 = scalar_lea.vmem %s1, 14
      %v741 = vld [vmem:[%s740] sm:$0x3]
      %v743 = vlaneseq
      %v744 = vshrl.u32 %v743, 7
      %v745 = vsub.s32 0, %v744
      %v746 = vrot.slane %v741, %v745
      %v747 = vlaneseq
      %v748 = vshrl.u32 %v747, 7
      %v749 = vsub.s32 1, %v748
      %v750 = vrot.slane %v741, %v749
      %v753 = vmul.f32 %v735, %v746
      %v754 = vmul.f32 %v739, %v750
      %755 = vrot.lane.b32.xlu0 %v577, 111
      %v756 = vpop.permute.xlu0 %755
      %757 = vrot.lane.b32.xlu0 %v578, 111
      %v758 = vpop.permute.xlu0 %757
      %vm759 = vcmask 908288
      %v760 = vsel %vm759, %v756, %v758
      %v764 = vsel %vm759, %v758, %v756
      %s765 = scalar_lea.vmem %s1, 16
      %v766 = vld [vmem:[%s765] sm:$0x3]
      %v768 = vlaneseq
      %v769 = vshrl.u32 %v768, 7
      %v770 = vsub.s32 0, %v769
      %v771 = vrot.slane %v766, %v770
      %v772 = vlaneseq
      %v773 = vshrl.u32 %v772, 7
      %v774 = vsub.s32 1, %v773
      %v775 = vrot.slane %v766, %v774
      %v778 = vmul.f32 %v760, %v771
      %v779 = vmul.f32 %v764, %v775
      %v780 = vpack.c.bf16 %v628, %v603
      %v781 = vpack.c.bf16 %v629, %v604
      %v782 = vpack.c.bf16 %v678, %v653
      %v783 = vpack.c.bf16 %v679, %v654
      %v784 = vpack.c.bf16 %v703, %v577
      %v785 = vpack.c.bf16 %v704, %v578
      %v786 = vpack.c.bf16 %v753, %v728
      %v787 = vpack.c.bf16 %v754, %v729
      %v788 = vpack.c.bf16 %v778, %v778
      %v789 = vpack.c.bf16 %v779, %v779
      %v790 = vld [vmem:[%s2] sm:$0xf]
      %v791 = vld [vmem:[%s2 + $0x4] sm:$0xf]
      %v792 = vld [vmem:[%s3] sm:$0xff]
      %v793 = vld [vmem:[%s3 + $0x8] sm:$0xff]
      %795 = vset.pattern.permute.xlu0 0
      %796 = vperm.xlu0 %795, %v792
      %v797 = vpop.permute.xlu0 %796
      %800 = vset.pattern.permute.xlu0 0
      %801 = vperm.xlu0 %800, %v793
      %v802 = vpop.permute.xlu0 %801
      %v806 = vunpack.c.l.b16 %v790
      %v807 = vunpack.c.l.b16 %v791
      %v808 = vpack.c.b16 %v807, %v806
      %vm809 = vcmask 588800
      %v811 = vsel %vm809, %v808, 0
      %vm813 = vcmask 1043456
      %v815 = vsel %vm813, %v788, 0
      %v818 = vsel %vm813, %v789, 0
      %820 = vmatprep.subr.bf16.mxu0 %v781
      %821 = vmatpush1.bf16.msra.mxu0 %v780
      %822 = vmatprep.subr.bf16.mxu0 %v783
      %823 = vmatpush1.bf16.msra.mxu0 %v782
      %824 = vmatprep.subr.bf16.mxu0 %v785
      %825 = vmatpush1.bf16.msra.mxu0 %v784
      %826 = vmatprep.subr.bf16.mxu0 %v787
      %827 = vmatpush1.bf16.msra.mxu0 %v786
      %828 = vmatprep.subr.bf16.mxu0 %v818
      %829 = vmatpush1.bf16.msra.mxu0 %v815
      %830 = vmatprep.subr.bf16.mxu0 0
      %831 = vmatpush1.bf16.msra.mxu0 0
      %832 = vmatprep.subr.bf16.mxu0 0
      %833 = vmatpush1.bf16.msra.mxu0 0
      %834 = vmatprep.subr.bf16.mxu0 0
      %835 = vmatpush1.bf16.msra.mxu0 0
      %836 = vmatprep.subr.bf16.mxu0 0
      %837 = vmatpush1.bf16.msra.mxu0 0
      %838 = vmatprep.subr.bf16.mxu0 0
      %839 = vmatpush1.bf16.msra.mxu0 0
      %840 = vmatprep.subr.bf16.mxu0 0
      %841 = vmatpush1.bf16.msra.mxu0 0
      %842 = vmatprep.subr.bf16.mxu0 0
      %843 = vmatpush1.bf16.msra.mxu0 0
      %844 = vmatprep.subr.bf16.mxu0 0
      %845 = vmatpush1.bf16.msra.mxu0 0
      %846 = vmatprep.subr.bf16.mxu0 0
      %847 = vmatpush1.bf16.msra.mxu0 0
      %848 = vmatprep.subr.bf16.mxu0 0
      %849 = vmatpush1.bf16.msra.mxu0 0
      %850 = vmatprep.subr.bf16.mxu0 0
      %851 = vmatpush1.bf16.msra.mxu0 0
      %852 = vmatprep.mubr.bf16.mxu0 0
      %853 = vmatmul.mubr.bf16.gmra.mrb[0].mxu0 %v811
      %v854 = vpop.f32.mrb[0].mxu0
      %v855 = vadd.f32 %v797, %v854
      %v856 = vpop.f32.mrb[0].mxu0
      %v857 = vadd.f32 %v797, %v856
      %v858 = vpop.f32.mrb[0].mxu0
      %v859 = vadd.f32 %v802, %v858
      %v860 = vpop.f32.mrb[0].mxu0
      %v861 = vadd.f32 %v802, %v860
      %862 = vdwg.mxu0
      %v863 = vsub.f32 0.0, %v855
      %v864 = vsub.f32 0.0, %v857
      %v865 = vsub.f32 0.0, %v859
      %v866 = vsub.f32 0.0, %v861
      %v867 = vmul.f32 %v863, 1.442695
      %v868 = vpow.pop %v867
      %v869 = vmul.f32 %v864, 1.442695
      %v870 = vpow.pop %v869
      %v871 = vmul.f32 %v865, 1.442695
      %v872 = vpow.pop %v871
      %v873 = vmul.f32 %v866, 1.442695
      %v874 = vpow.pop %v873
      %v875 = vadd.f32 %v868, 1.0
      %v876 = vadd.f32 %v870, 1.0
      %v877 = vadd.f32 %v872, 1.0
      %v878 = vadd.f32 %v874, 1.0
      %v879 = vrcp.pop %v875
      %v880 = vrcp.pop %v876
      %v881 = vrcp.pop %v877
      %v882 = vrcp.pop %v878
      %v883 = vmul.f32 %v855, %v879
      %v884 = vmul.f32 %v857, %v880
      %v885 = vmul.f32 %v859, %v881
      %v886 = vmul.f32 %v861, %v882
      %v887 = vpack.c.bf16 %v885, %v883
      %v888 = vpack.c.bf16 %v886, %v884
      %v889 = vld [vmem:[%s4] sm:$0xf]
      %v890 = vld [vmem:[%s4 + $0x4] sm:$0xf]
      %v891 = vld [vmem:[%s4 + $0x8] sm:$0xf]
      %v892 = vld [vmem:[%s4 + $0xc] sm:$0xf]
      %v893 = vld [vmem:[%s5] sm:$0xff]
      %v894 = vld [vmem:[%s5 + $0x8] sm:$0xff]
      %v895 = vld [vmem:[%s5 + $0x10] sm:$0xff]
      %v896 = vld [vmem:[%s5 + $0x18] sm:$0xff]
      %898 = vset.pattern.permute.xlu0 0
      %899 = vperm.xlu0 %898, %v893
      %v900 = vpop.permute.xlu0 %899
      %903 = vset.pattern.permute.xlu0 0
      %904 = vperm.xlu0 %903, %v894
      %v905 = vpop.permute.xlu0 %904
      %908 = vset.pattern.permute.xlu0 0
      %909 = vperm.xlu0 %908, %v895
      %v910 = vpop.permute.xlu0 %909
      %913 = vset.pattern.permute.xlu0 0
      %914 = vperm.xlu0 %913, %v896
      %v915 = vpop.permute.xlu0 %914
      %v921 = vunpack.c.l.b16 %v889
      %v922 = vunpack.c.l.b16 %v890
      %v923 = vunpack.c.l.b16 %v891
      %v924 = vunpack.c.l.b16 %v892
      %v925 = vpack.c.b16 %v922, %v921
      %v926 = vpack.c.b16 %v924, %v923
      %v928 = vsel %vm610, %v925, 0
      %v931 = vsel %vm610, %v926, 0
      %933 = vmatprep.subr.bf16.mxu0 %v888
      %934 = vmatpush1.bf16.msra.mxu0 %v887
      %935 = vmatprep.subr.bf16.mxu0 0
      %936 = vmatpush1.bf16.msra.mxu0 0
      %937 = vmatprep.subr.bf16.mxu0 0
      %938 = vmatpush1.bf16.msra.mxu0 0
      %939 = vmatprep.subr.bf16.mxu0 0
      %940 = vmatpush1.bf16.msra.mxu0 0
      %941 = vmatprep.subr.bf16.mxu0 0
      %942 = vmatpush1.bf16.msra.mxu0 0
      %943 = vmatprep.subr.bf16.mxu0 0
      %944 = vmatpush1.bf16.msra.mxu0 0
      %945 = vmatprep.subr.bf16.mxu0 0
      %946 = vmatpush1.bf16.msra.mxu0 0
      %947 = vmatprep.subr.bf16.mxu0 0
      %948 = vmatpush1.bf16.msra.mxu0 0
      %949 = vmatprep.subr.bf16.mxu0 0
      %950 = vmatpush1.bf16.msra.mxu0 0
      %951 = vmatprep.subr.bf16.mxu0 0
      %952 = vmatpush1.bf16.msra.mxu0 0
      %953 = vmatprep.subr.bf16.mxu0 0
      %954 = vmatpush1.bf16.msra.mxu0 0
      %955 = vmatprep.subr.bf16.mxu0 0
      %956 = vmatpush1.bf16.msra.mxu0 0
      %957 = vmatprep.subr.bf16.mxu0 0
      %958 = vmatpush1.bf16.msra.mxu0 0
      %959 = vmatprep.subr.bf16.mxu0 0
      %960 = vmatpush1.bf16.msra.mxu0 0
      %961 = vmatprep.subr.bf16.mxu0 0
      %962 = vmatpush1.bf16.msra.mxu0 0
      %963 = vmatprep.subr.bf16.mxu0 0
      %964 = vmatpush1.bf16.msra.mxu0 0
      %965 = vmatprep.mubr.bf16.mxu0 0
      %966 = vmatmul.mubr.bf16.gmra.mrb[0].mxu0 %v928
      %v967 = vpop.f32.mrb[0].mxu0
      %v968 = vadd.f32 %v900, %v967
      %v969 = vpop.f32.mrb[0].mxu0
      %v970 = vadd.f32 %v900, %v969
      %v971 = vpop.f32.mrb[0].mxu0
      %v972 = vadd.f32 %v905, %v971
      %v973 = vpop.f32.mrb[0].mxu0
      %v974 = vadd.f32 %v905, %v973
      %975 = vmatprep.mubr.bf16.mxu0 0
      %976 = vmatmul.mubr.bf16.gmra.mrb[0].mxu0 %v931
      %v977 = vpop.f32.mrb[0].mxu0
      %v978 = vadd.f32 %v910, %v977
      %v979 = vpop.f32.mrb[0].mxu0
      %v980 = vadd.f32 %v910, %v979
      %v981 = vpop.f32.mrb[0].mxu0
      %v982 = vadd.f32 %v915, %v981
      %v983 = vpop.f32.mrb[0].mxu0
      %v984 = vadd.f32 %v915, %v983
      %985 = vdwg.mxu0
      %v986 = vsub.f32 0.0, %v968
      %v987 = vsub.f32 0.0, %v970
      %v988 = vsub.f32 0.0, %v972
      %v989 = vsub.f32 0.0, %v974
      %v990 = vsub.f32 0.0, %v978
      %v991 = vsub.f32 0.0, %v980
      %v992 = vsub.f32 0.0, %v982
      %v993 = vsub.f32 0.0, %v984
      %v994 = vmul.f32 %v986, 1.442695
      %v995 = vpow.pop %v994
      %v996 = vmul.f32 %v987, 1.442695
      %v997 = vpow.pop %v996
      %v998 = vmul.f32 %v988, 1.442695
      %v999 = vpow.pop %v998
      %v1000 = vmul.f32 %v989, 1.442695
      %v1001 = vpow.pop %v1000
      %v1002 = vmul.f32 %v990, 1.442695
      %v1003 = vpow.pop %v1002
      %v1004 = vmul.f32 %v991, 1.442695
      %v1005 = vpow.pop %v1004
      %v1006 = vmul.f32 %v992, 1.442695
      %v1007 = vpow.pop %v1006
      %v1008 = vmul.f32 %v993, 1.442695
      %v1009 = vpow.pop %v1008
      %v1010 = vadd.f32 %v995, 1.0
      %v1011 = vadd.f32 %v997, 1.0
      %v1012 = vadd.f32 %v999, 1.0
      %v1013 = vadd.f32 %v1001, 1.0
      %v1014 = vadd.f32 %v1003, 1.0
      %v1015 = vadd.f32 %v1005, 1.0
      %v1016 = vadd.f32 %v1007, 1.0
      %v1017 = vadd.f32 %v1009, 1.0
      %v1018 = vrcp.pop %v1010
      %v1019 = vrcp.pop %v1011
      %v1020 = vrcp.pop %v1012
      %v1021 = vrcp.pop %v1013
      %v1022 = vrcp.pop %v1014
      %v1023 = vrcp.pop %v1015
      %v1024 = vrcp.pop %v1016
      %v1025 = vrcp.pop %v1017
      %v1026 = vmul.f32 %v968, %v1018
      %v1027 = vmul.f32 %v970, %v1019
      %v1028 = vmul.f32 %v972, %v1020
      %v1029 = vmul.f32 %v974, %v1021
      %v1030 = vmul.f32 %v978, %v1022
      %v1031 = vmul.f32 %v980, %v1023
      %v1032 = vmul.f32 %v982, %v1024
      %v1033 = vmul.f32 %v984, %v1025
      %v1034 = vpack.c.bf16 %v1032, %v1032
      %v1035 = vpack.c.bf16 %v1033, %v1033
      %v1036 = vld [vmem:[%s10] sm:$0xf]
      %v1037 = vld [vmem:[%s11] sm:$0xff]
      %1039 = vset.pattern.permute.xlu0 0
      %1040 = vperm.xlu0 %1039, %v1037
      %v1041 = vpop.permute.xlu0 %1040
      %vm1043 = vcmask 64512
      %v1045 = vsel %vm1043, %v1036, 0
      %v1048 = vsel %vm813, %v1034, 0
      %v1051 = vsel %vm813, %v1035, 0
      %1053 = vmatprep.subr.bf16.mxu0 %v1051
      %1054 = vmatpush1.bf16.msra.mxu0 %v1048
      %1055 = vmatprep.subr.bf16.mxu0 0
      %1056 = vmatpush1.bf16.msra.mxu0 0
      %1057 = vmatprep.subr.bf16.mxu0 0
      %1058 = vmatpush1.bf16.msra.mxu0 0
      %1059 = vmatprep.subr.bf16.mxu0 0
      %1060 = vmatpush1.bf16.msra.mxu0 0
      %1061 = vmatprep.subr.bf16.mxu0 0
      %1062 = vmatpush1.bf16.msra.mxu0 0
      %1063 = vmatprep.subr.bf16.mxu0 0
      %1064 = vmatpush1.bf16.msra.mxu0 0
      %1065 = vmatprep.subr.bf16.mxu0 0
      %1066 = vmatpush1.bf16.msra.mxu0 0
      %1067 = vmatprep.subr.bf16.mxu0 0
      %1068 = vmatpush1.bf16.msra.mxu0 0
      %1069 = vmatprep.subr.bf16.mxu0 0
      %1070 = vmatpush1.bf16.msra.mxu0 0
      %1071 = vmatprep.subr.bf16.mxu0 0
      %1072 = vmatpush1.bf16.msra.mxu0 0
      %1073 = vmatprep.subr.bf16.mxu0 0
      %1074 = vmatpush1.bf16.msra.mxu0 0
      %1075 = vmatprep.subr.bf16.mxu0 0
      %1076 = vmatpush1.bf16.msra.mxu0 0
      %1077 = vmatprep.subr.bf16.mxu0 0
      %1078 = vmatpush1.bf16.msra.mxu0 0
      %1079 = vmatprep.subr.bf16.mxu0 0
      %1080 = vmatpush1.bf16.msra.mxu0 0
      %1081 = vmatprep.subr.bf16.mxu0 0
      %1082 = vmatpush1.bf16.msra.mxu0 0
      %1083 = vmatprep.subr.bf16.mxu0 0
      %1084 = vmatpush1.bf16.msra.mxu0 0
      %1085 = vmatprep.mubr.bf16.mxu0 0
      %1086 = vmatmul.mubr.bf16.gmra.mrb[0].mxu0 %v1045
      %v1087 = vpop.f32.mrb[0].mxu0
      %v1088 = vadd.f32 %v1041, %v1087
      %v1089 = vpop.f32.mrb[0].mxu0
      %v1090 = vadd.f32 %v1041, %v1089
      %v1091 = vpop.f32.mrb[0].mxu0
      %v1092 = vpop.f32.mrb[0].mxu0
      %1093 = vdwg.mxu0
      %v1094 = vsub.f32 0.0, %v1088
      %v1095 = vsub.f32 0.0, %v1090
      %v1096 = vmul.f32 %v1094, 1.442695
      %v1097 = vpow.pop %v1096
      %v1098 = vmul.f32 %v1095, 1.442695
      %v1099 = vpow.pop %v1098
      %v1100 = vadd.f32 %v1097, 1.0
      %v1101 = vadd.f32 %v1099, 1.0
      %v1102 = vrcp.pop %v1100
      %v1103 = vrcp.pop %v1101
      %v1104 = vmul.f32 %v1088, %v1102
      %v1105 = vmul.f32 %v1090, %v1103
      %s1106 = scalar_lea.vmem %s6, 64
      %v1107 = vld [vmem:[%s1106] sm:$0xff]
      %v1108 = vld [vmem:[%s1106 + $0x8] sm:$0xff]
      %1110 = vset.pattern.permute.xlu0 0
      %1111 = vperm.xlu0 %1110, %v1107
      %v1112 = vpop.permute.xlu0 %1111
      %1115 = vset.pattern.permute.xlu0 0
      %1116 = vperm.xlu0 %1115, %v1108
      %v1117 = vpop.permute.xlu0 %1116
      %v1119 = vmul.f32 %v1112, %v1028
      %v1120 = vmul.f32 %v1112, %v1029
      %v1121 = vmul.f32 %v1117, %v1030
      %v1122 = vmul.f32 %v1117, %v1031
      %v1123 = vld [vmem:[%s6] sm:$0xff]
      %v1124 = vld [vmem:[%s6 + $0x8] sm:$0xff]
      %1127 = vrot.lane.b32.xlu0 %v1029, 17
      %v1128 = vpop.permute.xlu0 %1127
      %1129 = vrot.lane.b32.xlu0 %v1031, 17
      %v1130 = vpop.permute.xlu0 %1129
      %1135 = vrot.lane.b32.xlu0 %v1028, 17
      %v1136 = vpop.permute.xlu0 %1135
      %1137 = vrot.lane.b32.xlu0 %v1030, 17
      %v1138 = vpop.permute.xlu0 %1137
      %v1139 = vsel %vm586, %v1136, %v1128
      %v1140 = vsel %vm586, %v1138, %v1130
      %v1145 = vsel %vm586, %v1128, %v1136
      %v1146 = vsel %vm586, %v1130, %v1138
      %v1147 = vmul.f32 %v1145, %v596
      %v1148 = vmul.f32 %v1139, %v600
      %v1149 = vmul.f32 %v1146, %v596
      %v1150 = vmul.f32 %v1140, %v600
      %1152 = vset.pattern.permute.xlu0 0
      %1153 = vperm.xlu0 %1152, %v1123
      %v1154 = vpop.permute.xlu0 %1153
      %1157 = vset.pattern.permute.xlu0 0
      %1158 = vperm.xlu0 %1157, %v1124
      %v1159 = vpop.permute.xlu0 %1158
      %v1161 = vmul.f32 %v1154, %v1147
      %v1162 = vmul.f32 %v1154, %v1148
      %v1163 = vmul.f32 %v1159, %v1149
      %v1164 = vmul.f32 %v1159, %v1150
      %v1165 = vadd.f32 %v1119, %v1161
      %v1166 = vadd.f32 %v1120, %v1162
      %v1167 = vadd.f32 %v1121, %v1163
      %v1168 = vadd.f32 %v1122, %v1164
      %s1169 = scalar_lea.vmem %s6, 16
      %v1170 = vld [vmem:[%s1169] sm:$0xff]
      %v1171 = vld [vmem:[%s1169 + $0x8] sm:$0xff]
      %1172 = vrot.lane.b32.xlu0 %v1029, 16
      %v1173 = vpop.permute.xlu0 %1172
      %1174 = vrot.lane.b32.xlu0 %v1031, 16
      %v1175 = vpop.permute.xlu0 %1174
      %1178 = vrot.lane.b32.xlu0 %v1028, 16
      %v1179 = vpop.permute.xlu0 %1178
      %1180 = vrot.lane.b32.xlu0 %v1030, 16
      %v1181 = vpop.permute.xlu0 %1180
      %v1182 = vsel %vm610, %v1179, %v1173
      %v1183 = vsel %vm610, %v1181, %v1175
      %v1188 = vsel %vm610, %v1173, %v1179
      %v1189 = vsel %vm610, %v1175, %v1181
      %v1190 = vmul.f32 %v1188, %v621
      %v1191 = vmul.f32 %v1182, %v625
      %v1192 = vmul.f32 %v1189, %v621
      %v1193 = vmul.f32 %v1183, %v625
      %1195 = vset.pattern.permute.xlu0 0
      %1196 = vperm.xlu0 %1195, %v1170
      %v1197 = vpop.permute.xlu0 %1196
      %1200 = vset.pattern.permute.xlu0 0
      %1201 = vperm.xlu0 %1200, %v1171
      %v1202 = vpop.permute.xlu0 %1201
      %v1204 = vmul.f32 %v1197, %v1190
      %v1205 = vmul.f32 %v1197, %v1191
      %v1206 = vmul.f32 %v1202, %v1192
      %v1207 = vmul.f32 %v1202, %v1193
      %v1208 = vadd.f32 %v1165, %v1204
      %v1209 = vadd.f32 %v1166, %v1205
      %v1210 = vadd.f32 %v1167, %v1206
      %v1211 = vadd.f32 %v1168, %v1207
      %s1212 = scalar_lea.vmem %s6, 32
      %v1213 = vld [vmem:[%s1212] sm:$0xff]
      %v1214 = vld [vmem:[%s1212 + $0x8] sm:$0xff]
      %1215 = vrot.lane.b32.xlu0 %v1029, 15
      %v1216 = vpop.permute.xlu0 %1215
      %1217 = vrot.lane.b32.xlu0 %v1031, 15
      %v1218 = vpop.permute.xlu0 %1217
      %1221 = vrot.lane.b32.xlu0 %v1028, 15
      %v1222 = vpop.permute.xlu0 %1221
      %1223 = vrot.lane.b32.xlu0 %v1030, 15
      %v1224 = vpop.permute.xlu0 %1223
      %v1225 = vsel %vm635, %v1222, %v1216
      %v1226 = vsel %vm635, %v1224, %v1218
      %v1231 = vsel %vm635, %v1216, %v1222
      %v1232 = vsel %vm635, %v1218, %v1224
      %v1233 = vmul.f32 %v1231, %v646
      %v1234 = vmul.f32 %v1225, %v650
      %v1235 = vmul.f32 %v1232, %v646
      %v1236 = vmul.f32 %v1226, %v650
      %1238 = vset.pattern.permute.xlu0 0
      %1239 = vperm.xlu0 %1238, %v1213
      %v1240 = vpop.permute.xlu0 %1239
      %1243 = vset.pattern.permute.xlu0 0
      %1244 = vperm.xlu0 %1243, %v1214
      %v1245 = vpop.permute.xlu0 %1244
      %v1247 = vmul.f32 %v1240, %v1233
      %v1248 = vmul.f32 %v1240, %v1234
      %v1249 = vmul.f32 %v1245, %v1235
      %v1250 = vmul.f32 %v1245, %v1236
      %v1251 = vadd.f32 %v1208, %v1247
      %v1252 = vadd.f32 %v1209, %v1248
      %v1253 = vadd.f32 %v1210, %v1249
      %v1254 = vadd.f32 %v1211, %v1250
      %s1255 = scalar_lea.vmem %s6, 48
      %v1256 = vld [vmem:[%s1255] sm:$0xff]
      %v1257 = vld [vmem:[%s1255 + $0x8] sm:$0xff]
      %1258 = vrot.lane.b32.xlu0 %v1029, 1
      %v1259 = vpop.permute.xlu0 %1258
      %1260 = vrot.lane.b32.xlu0 %v1031, 1
      %v1261 = vpop.permute.xlu0 %1260
      %1264 = vrot.lane.b32.xlu0 %v1028, 1
      %v1265 = vpop.permute.xlu0 %1264
      %1266 = vrot.lane.b32.xlu0 %v1030, 1
      %v1267 = vpop.permute.xlu0 %1266
      %v1268 = vsel %vm660, %v1265, %v1259
      %v1269 = vsel %vm660, %v1267, %v1261
      %v1274 = vsel %vm660, %v1259, %v1265
      %v1275 = vsel %vm660, %v1261, %v1267
      %v1276 = vmul.f32 %v1274, %v671
      %v1277 = vmul.f32 %v1268, %v675
      %v1278 = vmul.f32 %v1275, %v671
      %v1279 = vmul.f32 %v1269, %v675
      %1281 = vset.pattern.permute.xlu0 0
      %1282 = vperm.xlu0 %1281, %v1256
      %v1283 = vpop.permute.xlu0 %1282
      %1286 = vset.pattern.permute.xlu0 0
      %1287 = vperm.xlu0 %1286, %v1257
      %v1288 = vpop.permute.xlu0 %1287
      %v1290 = vmul.f32 %v1283, %v1276
      %v1291 = vmul.f32 %v1283, %v1277
      %v1292 = vmul.f32 %v1288, %v1278
      %v1293 = vmul.f32 %v1288, %v1279
      %v1294 = vadd.f32 %v1251, %v1290
      %v1295 = vadd.f32 %v1252, %v1291
      %v1296 = vadd.f32 %v1253, %v1292
      %v1297 = vadd.f32 %v1254, %v1293
      %s1298 = scalar_lea.vmem %s6, 80
      %v1299 = vld [vmem:[%s1298] sm:$0xff]
      %v1300 = vld [vmem:[%s1298 + $0x8] sm:$0xff]
      %1301 = vrot.lane.b32.xlu0 %v1028, 127
      %v1302 = vpop.permute.xlu0 %1301
      %1303 = vrot.lane.b32.xlu0 %v1029, 127
      %v1304 = vpop.permute.xlu0 %1303
      %1305 = vrot.lane.b32.xlu0 %v1030, 127
      %v1306 = vpop.permute.xlu0 %1305
      %1307 = vrot.lane.b32.xlu0 %v1031, 127
      %v1308 = vpop.permute.xlu0 %1307
      %v1309 = vsel %vm684, %v1302, %v1304
      %v1310 = vsel %vm684, %v1306, %v1308
      %v1317 = vsel %vm684, %v1304, %v1302
      %v1318 = vsel %vm684, %v1308, %v1306
      %v1319 = vmul.f32 %v1309, %v696
      %v1320 = vmul.f32 %v1317, %v700
      %v1321 = vmul.f32 %v1310, %v696
      %v1322 = vmul.f32 %v1318, %v700
      %1324 = vset.pattern.permute.xlu0 0
      %1325 = vperm.xlu0 %1324, %v1299
      %v1326 = vpop.permute.xlu0 %1325
      %1329 = vset.pattern.permute.xlu0 0
      %1330 = vperm.xlu0 %1329, %v1300
      %v1331 = vpop.permute.xlu0 %1330
      %v1333 = vmul.f32 %v1326, %v1319
      %v1334 = vmul.f32 %v1326, %v1320
      %v1335 = vmul.f32 %v1331, %v1321
      %v1336 = vmul.f32 %v1331, %v1322
      %v1337 = vadd.f32 %v1294, %v1333
      %v1338 = vadd.f32 %v1295, %v1334
      %v1339 = vadd.f32 %v1296, %v1335
      %v1340 = vadd.f32 %v1297, %v1336
      %s1341 = scalar_lea.vmem %s6, 96
      %v1342 = vld [vmem:[%s1341] sm:$0xff]
      %v1343 = vld [vmem:[%s1341 + $0x8] sm:$0xff]
      %1344 = vrot.lane.b32.xlu0 %v1028, 113
      %v1345 = vpop.permute.xlu0 %1344
      %1346 = vrot.lane.b32.xlu0 %v1029, 113
      %v1347 = vpop.permute.xlu0 %1346
      %1348 = vrot.lane.b32.xlu0 %v1030, 113
      %v1349 = vpop.permute.xlu0 %1348
      %1350 = vrot.lane.b32.xlu0 %v1031, 113
      %v1351 = vpop.permute.xlu0 %1350
      %v1352 = vsel %vm709, %v1345, %v1347
      %v1353 = vsel %vm709, %v1349, %v1351
      %v1360 = vsel %vm709, %v1347, %v1345
      %v1361 = vsel %vm709, %v1351, %v1349
      %v1362 = vmul.f32 %v1352, %v721
      %v1363 = vmul.f32 %v1360, %v725
      %v1364 = vmul.f32 %v1353, %v721
      %v1365 = vmul.f32 %v1361, %v725
      %1367 = vset.pattern.permute.xlu0 0
      %1368 = vperm.xlu0 %1367, %v1342
      %v1369 = vpop.permute.xlu0 %1368
      %1372 = vset.pattern.permute.xlu0 0
      %1373 = vperm.xlu0 %1372, %v1343
      %v1374 = vpop.permute.xlu0 %1373
      %v1376 = vmul.f32 %v1369, %v1362
      %v1377 = vmul.f32 %v1369, %v1363
      %v1378 = vmul.f32 %v1374, %v1364
      %v1379 = vmul.f32 %v1374, %v1365
      %v1380 = vadd.f32 %v1337, %v1376
      %v1381 = vadd.f32 %v1338, %v1377
      %v1382 = vadd.f32 %v1339, %v1378
      %v1383 = vadd.f32 %v1340, %v1379
      %s1384 = scalar_lea.vmem %s6, 112
      %v1385 = vld [vmem:[%s1384] sm:$0xff]
      %v1386 = vld [vmem:[%s1384 + $0x8] sm:$0xff]
      %1387 = vrot.lane.b32.xlu0 %v1028, 112
      %v1388 = vpop.permute.xlu0 %1387
      %1389 = vrot.lane.b32.xlu0 %v1029, 112
      %v1390 = vpop.permute.xlu0 %1389
      %1391 = vrot.lane.b32.xlu0 %v1030, 112
      %v1392 = vpop.permute.xlu0 %1391
      %1393 = vrot.lane.b32.xlu0 %v1031, 112
      %v1394 = vpop.permute.xlu0 %1393
      %v1395 = vsel %vm734, %v1388, %v1390
      %v1396 = vsel %vm734, %v1392, %v1394
      %v1403 = vsel %vm734, %v1390, %v1388
      %v1404 = vsel %vm734, %v1394, %v1392
      %v1405 = vmul.f32 %v1395, %v746
      %v1406 = vmul.f32 %v1403, %v750
      %v1407 = vmul.f32 %v1396, %v746
      %v1408 = vmul.f32 %v1404, %v750
      %1410 = vset.pattern.permute.xlu0 0
      %1411 = vperm.xlu0 %1410, %v1385
      %v1412 = vpop.permute.xlu0 %1411
      %1415 = vset.pattern.permute.xlu0 0
      %1416 = vperm.xlu0 %1415, %v1386
      %v1417 = vpop.permute.xlu0 %1416
      %v1419 = vmul.f32 %v1412, %v1405
      %v1420 = vmul.f32 %v1412, %v1406
      %v1421 = vmul.f32 %v1417, %v1407
      %v1422 = vmul.f32 %v1417, %v1408
      %v1423 = vadd.f32 %v1380, %v1419
      %v1424 = vadd.f32 %v1381, %v1420
      %v1425 = vadd.f32 %v1382, %v1421
      %v1426 = vadd.f32 %v1383, %v1422
      %s1427 = scalar_lea.vmem %s6, 128
      %v1428 = vld [vmem:[%s1427] sm:$0xff]
      %v1429 = vld [vmem:[%s1427 + $0x8] sm:$0xff]
      %1430 = vrot.lane.b32.xlu0 %v1028, 111
      %v1431 = vpop.permute.xlu0 %1430
      %1432 = vrot.lane.b32.xlu0 %v1029, 111
      %v1433 = vpop.permute.xlu0 %1432
      %1434 = vrot.lane.b32.xlu0 %v1030, 111
      %v1435 = vpop.permute.xlu0 %1434
      %1436 = vrot.lane.b32.xlu0 %v1031, 111
      %v1437 = vpop.permute.xlu0 %1436
      %v1438 = vsel %vm759, %v1431, %v1433
      %v1439 = vsel %vm759, %v1435, %v1437
      %v1446 = vsel %vm759, %v1433, %v1431
      %v1447 = vsel %vm759, %v1437, %v1435
      %v1448 = vmul.f32 %v1438, %v771
      %v1449 = vmul.f32 %v1446, %v775
      %v1450 = vmul.f32 %v1439, %v771
      %v1451 = vmul.f32 %v1447, %v775
      %1453 = vset.pattern.permute.xlu0 0
      %1454 = vperm.xlu0 %1453, %v1428
      %v1455 = vpop.permute.xlu0 %1454
      %1458 = vset.pattern.permute.xlu0 0
      %1459 = vperm.xlu0 %1458, %v1429
      %v1460 = vpop.permute.xlu0 %1459
      %v1462 = vmul.f32 %v1455, %v1448
      %v1463 = vmul.f32 %v1455, %v1449
      %v1464 = vmul.f32 %v1460, %v1450
      %v1465 = vmul.f32 %v1460, %v1451
      %v1466 = vadd.f32 %v1423, %v1462
      %v1467 = vadd.f32 %v1424, %v1463
      %v1468 = vadd.f32 %v1425, %v1464
      %v1469 = vadd.f32 %v1426, %v1465
      %v1470 = vld [vmem:[%s7] sm:$0xff]
      %v1471 = vld [vmem:[%s7 + $0x8] sm:$0xff]
      %1473 = vset.pattern.permute.xlu0 0
      %1474 = vperm.xlu0 %1473, %v1470
      %v1475 = vpop.permute.xlu0 %1474
      %1478 = vset.pattern.permute.xlu0 0
      %1479 = vperm.xlu0 %1478, %v1471
      %v1480 = vpop.permute.xlu0 %1479
      %v1482 = vadd.f32 %v1466, %v1475
      %v1483 = vadd.f32 %v1467, %v1475
      %v1484 = vadd.f32 %v1468, %v1480
      %v1485 = vadd.f32 %v1469, %v1480
      %v1486 = vsub.f32 0.0, %v1482
      %v1487 = vsub.f32 0.0, %v1483
      %v1488 = vsub.f32 0.0, %v1484
      %v1489 = vsub.f32 0.0, %v1485
      %v1490 = vmul.f32 %v1486, 1.442695
      %v1491 = vpow.pop %v1490
      %v1492 = vmul.f32 %v1487, 1.442695
      %v1493 = vpow.pop %v1492
      %v1494 = vmul.f32 %v1488, 1.442695
      %v1495 = vpow.pop %v1494
      %v1496 = vmul.f32 %v1489, 1.442695
      %v1497 = vpow.pop %v1496
      %v1498 = vadd.f32 %v1491, 1.0
      %v1499 = vadd.f32 %v1493, 1.0
      %v1500 = vadd.f32 %v1495, 1.0
      %v1501 = vadd.f32 %v1497, 1.0
      %v1502 = vrcp.pop %v1498
      %v1503 = vrcp.pop %v1499
      %v1504 = vrcp.pop %v1500
      %v1505 = vrcp.pop %v1501
      %v1506 = vmul.f32 %v1482, %v1502
      %v1507 = vmul.f32 %v1483, %v1503
      %v1508 = vmul.f32 %v1484, %v1504
      %v1509 = vmul.f32 %v1485, %v1505
      %v1510 = vpack.c.bf16 %v1508, %v1506
      %v1511 = vpack.c.bf16 %v1509, %v1507
      %v1512 = vld [vmem:[%s8] sm:$0xf]
      %v1513 = vld [vmem:[%s9] sm:$0xff]
      %1515 = vset.pattern.permute.xlu0 0
      %1516 = vperm.xlu0 %1515, %v1513
      %v1517 = vpop.permute.xlu0 %1516
      %v1520 = vsel %vm610, %v1512, 0
      %1522 = vmatprep.subr.bf16.mxu0 %v1511
      %1523 = vmatpush1.bf16.msra.mxu0 %v1510
      %1524 = vmatprep.subr.bf16.mxu0 0
      %1525 = vmatpush1.bf16.msra.mxu0 0
      %1526 = vmatprep.subr.bf16.mxu0 0
      %1527 = vmatpush1.bf16.msra.mxu0 0
      %1528 = vmatprep.subr.bf16.mxu0 0
      %1529 = vmatpush1.bf16.msra.mxu0 0
      %1530 = vmatprep.subr.bf16.mxu0 0
      %1531 = vmatpush1.bf16.msra.mxu0 0
      %1532 = vmatprep.subr.bf16.mxu0 0
      %1533 = vmatpush1.bf16.msra.mxu0 0
      %1534 = vmatprep.subr.bf16.mxu0 0
      %1535 = vmatpush1.bf16.msra.mxu0 0
      %1536 = vmatprep.subr.bf16.mxu0 0
      %1537 = vmatpush1.bf16.msra.mxu0 0
      %1538 = vmatprep.subr.bf16.mxu0 0
      %1539 = vmatpush1.bf16.msra.mxu0 0
      %1540 = vmatprep.subr.bf16.mxu0 0
      %1541 = vmatpush1.bf16.msra.mxu0 0
      %1542 = vmatprep.subr.bf16.mxu0 0
      %1543 = vmatpush1.bf16.msra.mxu0 0
      %1544 = vmatprep.subr.bf16.mxu0 0
      %1545 = vmatpush1.bf16.msra.mxu0 0
      %1546 = vmatprep.subr.bf16.mxu0 0
      %1547 = vmatpush1.bf16.msra.mxu0 0
      %1548 = vmatprep.subr.bf16.mxu0 0
      %1549 = vmatpush1.bf16.msra.mxu0 0
      %1550 = vmatprep.subr.bf16.mxu0 0
      %1551 = vmatpush1.bf16.msra.mxu0 0
      %1552 = vmatprep.subr.bf16.mxu0 0
      %1553 = vmatpush1.bf16.msra.mxu0 0
      %1554 = vmatprep.mubr.bf16.mxu0 0
      %1555 = vmatmul.mubr.bf16.gmra.mrb[0].mxu0 %v1520
      %v1556 = vpop.f32.mrb[0].mxu0
      %v1557 = vadd.f32 %v1517, %v1556
      %v1558 = vpop.f32.mrb[0].mxu0
      %v1559 = vadd.f32 %v1517, %v1558
      %v1560 = vpop.f32.mrb[0].mxu0
      %v1561 = vpop.f32.mrb[0].mxu0
      %1562 = vdwg.mxu0
      %v1563 = vsub.f32 0.0, %v1557
      %v1564 = vsub.f32 0.0, %v1559
      %v1565 = vmul.f32 %v1563, 1.442695
      %v1566 = vpow.pop %v1565
      %v1567 = vmul.f32 %v1564, 1.442695
      %v1568 = vpow.pop %v1567
      %v1569 = vadd.f32 %v1566, 1.0
      %v1570 = vadd.f32 %v1568, 1.0
      %v1571 = vrcp.pop %v1569
      %v1572 = vrcp.pop %v1570
      %v1573 = vmul.f32 %v1557, %v1571
      %v1574 = vmul.f32 %v1559, %v1572
      %1576 = vrot.lane.b32.xlu0 %v886, 17
      %v1577 = vpop.permute.xlu0 %1576
      %1580 = vrot.lane.b32.xlu0 %v885, 17
      %v1581 = vpop.permute.xlu0 %1580
      %v1582 = vsel %vm586, %v1581, %v1577
      %v1585 = vsel %vm586, %v1577, %v1581
      %v1586 = vmul.f32 %v1585, %v596
      %v1587 = vmul.f32 %v1582, %v600
      %1588 = vrot.lane.b32.xlu0 %v886, 16
      %v1589 = vpop.permute.xlu0 %1588
      %1591 = vrot.lane.b32.xlu0 %v885, 16
      %v1592 = vpop.permute.xlu0 %1591
      %v1593 = vsel %vm610, %v1592, %v1589
      %v1596 = vsel %vm610, %v1589, %v1592
      %v1597 = vmul.f32 %v1596, %v621
      %v1598 = vmul.f32 %v1593, %v625
      %1599 = vrot.lane.b32.xlu0 %v886, 15
      %v1600 = vpop.permute.xlu0 %1599
      %1602 = vrot.lane.b32.xlu0 %v885, 15
      %v1603 = vpop.permute.xlu0 %1602
      %v1604 = vsel %vm635, %v1603, %v1600
      %v1607 = vsel %vm635, %v1600, %v1603
      %v1608 = vmul.f32 %v1607, %v646
      %v1609 = vmul.f32 %v1604, %v650
      %1610 = vrot.lane.b32.xlu0 %v886, 1
      %v1611 = vpop.permute.xlu0 %1610
      %1613 = vrot.lane.b32.xlu0 %v885, 1
      %v1614 = vpop.permute.xlu0 %1613
      %v1615 = vsel %vm660, %v1614, %v1611
      %v1618 = vsel %vm660, %v1611, %v1614
      %v1619 = vmul.f32 %v1618, %v671
      %v1620 = vmul.f32 %v1615, %v675
      %1621 = vrot.lane.b32.xlu0 %v885, 127
      %v1622 = vpop.permute.xlu0 %1621
      %1623 = vrot.lane.b32.xlu0 %v886, 127
      %v1624 = vpop.permute.xlu0 %1623
      %v1625 = vsel %vm684, %v1622, %v1624
      %v1629 = vsel %vm684, %v1624, %v1622
      %v1630 = vmul.f32 %v1625, %v696
      %v1631 = vmul.f32 %v1629, %v700
      %1632 = vrot.lane.b32.xlu0 %v885, 113
      %v1633 = vpop.permute.xlu0 %1632
      %1634 = vrot.lane.b32.xlu0 %v886, 113
      %v1635 = vpop.permute.xlu0 %1634
      %v1636 = vsel %vm709, %v1633, %v1635
      %v1640 = vsel %vm709, %v1635, %v1633
      %v1641 = vmul.f32 %v1636, %v721
      %v1642 = vmul.f32 %v1640, %v725
      %1643 = vrot.lane.b32.xlu0 %v885, 112
      %v1644 = vpop.permute.xlu0 %1643
      %1645 = vrot.lane.b32.xlu0 %v886, 112
      %v1646 = vpop.permute.xlu0 %1645
      %v1647 = vsel %vm734, %v1644, %v1646
      %v1651 = vsel %vm734, %v1646, %v1644
      %v1652 = vmul.f32 %v1647, %v746
      %v1653 = vmul.f32 %v1651, %v750
      %1654 = vrot.lane.b32.xlu0 %v885, 111
      %v1655 = vpop.permute.xlu0 %1654
      %1656 = vrot.lane.b32.xlu0 %v886, 111
      %v1657 = vpop.permute.xlu0 %1656
      %v1658 = vsel %vm759, %v1655, %v1657
      %v1662 = vsel %vm759, %v1657, %v1655
      %v1663 = vmul.f32 %v1658, %v771
      %v1664 = vmul.f32 %v1662, %v775
      %v1665 = vpack.c.bf16 %v1597, %v1586
      %v1666 = vpack.c.bf16 %v1598, %v1587
      %v1667 = vpack.c.bf16 %v1619, %v1608
      %v1668 = vpack.c.bf16 %v1620, %v1609
      %v1669 = vpack.c.bf16 %v1630, %v885
      %v1670 = vpack.c.bf16 %v1631, %v886
      %v1671 = vpack.c.bf16 %v1652, %v1641
      %v1672 = vpack.c.bf16 %v1653, %v1642
      %v1673 = vpack.c.bf16 %v1663, %v1663
      %v1674 = vpack.c.bf16 %v1664, %v1664
      %v1675 = vld [vmem:[%s12] sm:$0xf]
      %v1676 = vld [vmem:[%s13] sm:$0xff]
      %1678 = vset.pattern.permute.xlu0 0
      %1679 = vperm.xlu0 %1678, %v1676
      %v1680 = vpop.permute.xlu0 %1679
      %v1683 = vsel %vm809, %v1675, 0
      %v1686 = vsel %vm813, %v1673, 0
      %v1689 = vsel %vm813, %v1674, 0
      %1691 = vmatprep.subr.bf16.mxu0 %v1666
      %1692 = vmatpush1.bf16.msra.mxu0 %v1665
      %1693 = vmatprep.subr.bf16.mxu0 %v1668
      %1694 = vmatpush1.bf16.msra.mxu0 %v1667
      %1695 = vmatprep.subr.bf16.mxu0 %v1670
      %1696 = vmatpush1.bf16.msra.mxu0 %v1669
      %1697 = vmatprep.subr.bf16.mxu0 %v1672
      %1698 = vmatpush1.bf16.msra.mxu0 %v1671
      %1699 = vmatprep.subr.bf16.mxu0 %v1689
      %1700 = vmatpush1.bf16.msra.mxu0 %v1686
      %1701 = vmatprep.subr.bf16.mxu0 0
      %1702 = vmatpush1.bf16.msra.mxu0 0
      %1703 = vmatprep.subr.bf16.mxu0 0
      %1704 = vmatpush1.bf16.msra.mxu0 0
      %1705 = vmatprep.subr.bf16.mxu0 0
      %1706 = vmatpush1.bf16.msra.mxu0 0
      %1707 = vmatprep.subr.bf16.mxu0 0
      %1708 = vmatpush1.bf16.msra.mxu0 0
      %1709 = vmatprep.subr.bf16.mxu0 0
      %1710 = vmatpush1.bf16.msra.mxu0 0
      %1711 = vmatprep.subr.bf16.mxu0 0
      %1712 = vmatpush1.bf16.msra.mxu0 0
      %1713 = vmatprep.subr.bf16.mxu0 0
      %1714 = vmatpush1.bf16.msra.mxu0 0
      %1715 = vmatprep.subr.bf16.mxu0 0
      %1716 = vmatpush1.bf16.msra.mxu0 0
      %1717 = vmatprep.subr.bf16.mxu0 0
      %1718 = vmatpush1.bf16.msra.mxu0 0
      %1719 = vmatprep.subr.bf16.mxu0 0
      %1720 = vmatpush1.bf16.msra.mxu0 0
      %1721 = vmatprep.subr.bf16.mxu0 0
      %1722 = vmatpush1.bf16.msra.mxu0 0
      %1723 = vmatprep.mubr.bf16.mxu0 0
      %1724 = vmatmul.mubr.bf16.gmra.mrb[0].mxu0 %v1683
      %v1725 = vpop.f32.mrb[0].mxu0
      %v1726 = vadd.f32 %v1680, %v1725
      %v1727 = vpop.f32.mrb[0].mxu0
      %v1728 = vadd.f32 %v1680, %v1727
      %v1729 = vpop.f32.mrb[0].mxu0
      %v1730 = vpop.f32.mrb[0].mxu0
      %1731 = vdwg.mxu0
      %v1732 = vsub.f32 0.0, %v1726
      %v1733 = vsub.f32 0.0, %v1728
      %v1734 = vmul.f32 %v1732, 1.442695
      %v1735 = vpow.pop %v1734
      %v1736 = vmul.f32 %v1733, 1.442695
      %v1737 = vpow.pop %v1736
      %v1738 = vadd.f32 %v1735, 1.0
      %v1739 = vadd.f32 %v1737, 1.0
      %v1740 = vrcp.pop %v1738
      %v1741 = vrcp.pop %v1739
      %v1742 = vmul.f32 %v1726, %v1740
      %v1743 = vmul.f32 %v1728, %v1741
      %v1744 = vpack.c.bf16 %v1742, %v1742
      %v1745 = vpack.c.bf16 %v1743, %v1743
      %v1746 = vld [vmem:[%s14] sm:$0xf]
      %v1747 = vld [vmem:[%s15] sm:$0xff]
      %1749 = vset.pattern.permute.xlu0 0
      %1750 = vperm.xlu0 %1749, %v1747
      %v1751 = vpop.permute.xlu0 %1750
      %v1754 = vsel %vm1043, %v1746, 0
      %v1757 = vsel %vm813, %v1744, 0
      %v1760 = vsel %vm813, %v1745, 0
      %1762 = vmatprep.subr.bf16.mxu0 %v1760
      %1763 = vmatpush1.bf16.msra.mxu0 %v1757
      %1764 = vmatprep.subr.bf16.mxu0 0
      %1765 = vmatpush1.bf16.msra.mxu0 0
      %1766 = vmatprep.subr.bf16.mxu0 0
      %1767 = vmatpush1.bf16.msra.mxu0 0
      %1768 = vmatprep.subr.bf16.mxu0 0
      %1769 = vmatpush1.bf16.msra.mxu0 0
      %1770 = vmatprep.subr.bf16.mxu0 0
      %1771 = vmatpush1.bf16.msra.mxu0 0
      %1772 = vmatprep.subr.bf16.mxu0 0
      %1773 = vmatpush1.bf16.msra.mxu0 0
      %1774 = vmatprep.subr.bf16.mxu0 0
      %1775 = vmatpush1.bf16.msra.mxu0 0
      %1776 = vmatprep.subr.bf16.mxu0 0
      %1777 = vmatpush1.bf16.msra.mxu0 0
      %1778 = vmatprep.subr.bf16.mxu0 0
      %1779 = vmatpush1.bf16.msra.mxu0 0
      %1780 = vmatprep.subr.bf16.mxu0 0
      %1781 = vmatpush1.bf16.msra.mxu0 0
      %1782 = vmatprep.subr.bf16.mxu0 0
      %1783 = vmatpush1.bf16.msra.mxu0 0
      %1784 = vmatprep.subr.bf16.mxu0 0
      %1785 = vmatpush1.bf16.msra.mxu0 0
      %1786 = vmatprep.subr.bf16.mxu0 0
      %1787 = vmatpush1.bf16.msra.mxu0 0
      %1788 = vmatprep.subr.bf16.mxu0 0
      %1789 = vmatpush1.bf16.msra.mxu0 0
      %1790 = vmatprep.subr.bf16.mxu0 0
      %1791 = vmatpush1.bf16.msra.mxu0 0
      %1792 = vmatprep.subr.bf16.mxu0 0
      %1793 = vmatpush1.bf16.msra.mxu0 0
      %1794 = vmatprep.mubr.bf16.mxu0 0
      %1795 = vmatmul.mubr.bf16.gmra.mrb[0].mxu0 %v1754
      %v1796 = vpop.f32.mrb[0].mxu0
      %v1797 = vadd.f32 %v1751, %v1796
      %v1798 = vpop.f32.mrb[0].mxu0
      %v1799 = vadd.f32 %v1751, %v1798
      %v1800 = vpop.f32.mrb[0].mxu0
      %v1801 = vpop.f32.mrb[0].mxu0
      %1802 = vdwg.mxu0
      %v1803 = vsub.f32 0.0, %v1797
      %v1804 = vsub.f32 0.0, %v1799
      %v1805 = vmul.f32 %v1803, 1.442695
      %v1806 = vpow.pop %v1805
      %v1807 = vmul.f32 %v1804, 1.442695
      %v1808 = vpow.pop %v1807
      %v1809 = vadd.f32 %v1806, 1.0
      %v1810 = vadd.f32 %v1808, 1.0
      %v1811 = vrcp.pop %v1809
      %v1812 = vrcp.pop %v1810
      %v1813 = vmul.f32 %v1797, %v1811
      %v1814 = vmul.f32 %v1799, %v1812
      %v1815 = vpack.c.bf16 %v1573, %v1026
      %v1816 = vpack.c.bf16 %v1574, %v1027
      %v1817 = vpack.c.bf16 %v1104, %v883
      %v1818 = vpack.c.bf16 %v1105, %v884
      %v1819 = vpack.c.bf16 %v1813, %v885
      %v1820 = vpack.c.bf16 %v1814, %v886
      %v1821 = vld [vmem:[%s16] sm:$0xf]
      %v1822 = vld [vmem:[%s16 + $0x4] sm:$0xf]
      %v1823 = vld [vmem:[%s17] sm:$0xff]
      %v1824 = vld [vmem:[%s17 + $0x8] sm:$0xff]
      %1826 = vset.pattern.permute.xlu0 0
      %1827 = vperm.xlu0 %1826, %v1823
      %v1828 = vpop.permute.xlu0 %1827
      %1831 = vset.pattern.permute.xlu0 0
      %1832 = vperm.xlu0 %1831, %v1824
      %v1833 = vpop.permute.xlu0 %1832
      %v1837 = vunpack.c.l.b16 %v1821
      %v1838 = vunpack.c.l.b16 %v1822
      %v1839 = vpack.c.b16 %v1838, %v1837
      %vm1840 = vcmask 392192
      %v1842 = vsel %vm1840, %v1839, 0
      %1844 = vmatprep.subr.bf16.mxu0 %v1816
      %1845 = vmatpush1.bf16.msra.mxu0 %v1815
      %1846 = vmatprep.subr.bf16.mxu0 %v1818
      %1847 = vmatpush1.bf16.msra.mxu0 %v1817
      %1848 = vmatprep.subr.bf16.mxu0 %v1820
      %1849 = vmatpush1.bf16.msra.mxu0 %v1819
      %1850 = vmatprep.subr.bf16.mxu0 0
      %1851 = vmatpush1.bf16.msra.mxu0 0
      %1852 = vmatprep.subr.bf16.mxu0 0
      %1853 = vmatpush1.bf16.msra.mxu0 0
      %1854 = vmatprep.subr.bf16.mxu0 0
      %1855 = vmatpush1.bf16.msra.mxu0 0
      %1856 = vmatprep.subr.bf16.mxu0 0
      %1857 = vmatpush1.bf16.msra.mxu0 0
      %1858 = vmatprep.subr.bf16.mxu0 0
      %1859 = vmatpush1.bf16.msra.mxu0 0
      %1860 = vmatprep.subr.bf16.mxu0 0
      %1861 = vmatpush1.bf16.msra.mxu0 0
      %1862 = vmatprep.subr.bf16.mxu0 0
      %1863 = vmatpush1.bf16.msra.mxu0 0
      %1864 = vmatprep.subr.bf16.mxu0 0
      %1865 = vmatpush1.bf16.msra.mxu0 0
      %1866 = vmatprep.subr.bf16.mxu0 0
      %1867 = vmatpush1.bf16.msra.mxu0 0
      %1868 = vmatprep.subr.bf16.mxu0 0
      %1869 = vmatpush1.bf16.msra.mxu0 0
      %1870 = vmatprep.subr.bf16.mxu0 0
      %1871 = vmatpush1.bf16.msra.mxu0 0
      %1872 = vmatprep.subr.bf16.mxu0 0
      %1873 = vmatpush1.bf16.msra.mxu0 0
      %1874 = vmatprep.subr.bf16.mxu0 0
      %1875 = vmatpush1.bf16.msra.mxu0 0
      %1876 = vmatprep.mubr.bf16.mxu0 0
      %1877 = vmatmul.mubr.bf16.gmra.mrb[0].mxu0 %v1842
      %v1878 = vpop.f32.mrb[0].mxu0
      %v1879 = vadd.f32 %v1828, %v1878
      %v1880 = vpop.f32.mrb[0].mxu0
      %v1881 = vadd.f32 %v1828, %v1880
      %v1882 = vpop.f32.mrb[0].mxu0
      %v1883 = vadd.f32 %v1833, %v1882
      %v1884 = vpop.f32.mrb[0].mxu0
      %v1885 = vadd.f32 %v1833, %v1884
      %1886 = vdwg.mxu0
      %v1887 = vsub.f32 0.0, %v1879
      %v1888 = vsub.f32 0.0, %v1881
      %v1889 = vsub.f32 0.0, %v1883
      %v1890 = vsub.f32 0.0, %v1885
      %v1891 = vmul.f32 %v1887, 1.442695
      %v1892 = vpow.pop %v1891
      %v1893 = vmul.f32 %v1888, 1.442695
      %v1894 = vpow.pop %v1893
      %v1895 = vmul.f32 %v1889, 1.442695
      %v1896 = vpow.pop %v1895
      %v1897 = vmul.f32 %v1890, 1.442695
      %v1898 = vpow.pop %v1897
      %v1899 = vadd.f32 %v1892, 1.0
      %v1900 = vadd.f32 %v1894, 1.0
      %v1901 = vadd.f32 %v1896, 1.0
      %v1902 = vadd.f32 %v1898, 1.0
      %v1903 = vrcp.pop %v1899
      %v1904 = vrcp.pop %v1900
      %v1905 = vrcp.pop %v1901
      %v1906 = vrcp.pop %v1902
      %v1907 = vmul.f32 %v1879, %v1903
      %v1908 = vmul.f32 %v1881, %v1904
      %v1909 = vmul.f32 %v1883, %v1905
      %v1910 = vmul.f32 %v1885, %v1906
      %1911 = vst [vmem:[%s575] sm:$0xff] %v1907
      %1912 = vst [vmem:[%s575 + $0x8] sm:$0xff] %v1908
      %1913 = vst [vmem:[%s575 + $0x10] sm:$0xff] %v1909
      %1914 = vst [vmem:[%s575 + $0x18] sm:$0xff] %v1910
      %p1915 = scmp.lt.s32.totalorder %s29, 3
      %s1916 = scalar_select %p1915, %s29, 3
      %s1917 = smul.addr %s1916, 4
      %s1918 = smul.addr %s1917, 8
      %s1919 = scalar_lea.vmem %s18, %s1918
      // Predicated region
      $region93: #{famnet_pallas.1} parent=91 // pred_check
        %p1920 = pneg %p430
      $region94: #{famnet_pallas.1} parent=91 // pred_check_branch
        %1922 = sbr.rel (%p1920) target = $region96
      $region95: #{famnet_pallas.1} parent=91 // pred_region
        _
      $region96: #{famnet_pallas.1} parent=91 // pred_fallthru
        _
    $region92: #{famnet_pallas.1} parent=5 // pred_fallthru
      _
    %p1923 = scmp.le.s32.totalorder 2, %s24
    // Predicated region
    $region97: #{famnet_pallas.1} parent=5 // pred_check
      %p1924 = pneg %p1923
    $region98: #{famnet_pallas.1} parent=5 // pred_check_branch
      %1926 = sbr.rel (%p1924) target = $region100
    $region99: #{famnet_pallas.1} parent=5 // pred_region
      %s1927 = ssub.s32 %s24, 2
      // Predicated region
      $region101: #{famnet_pallas.1} parent=99 // pred_check
        %p1928 = pneg %p436
      $region102: #{famnet_pallas.1} parent=99 // pred_check_branch
        %1930 = sbr.rel (%p1928) target = $region104
      $region103: #{famnet_pallas.1} parent=99 // pred_region
        %p1931 = scmp.lt.s32.totalorder %s30, 3
        %s1932 = scalar_select %p1931, %s30, 3
        %s1933 = smul.addr %s1932, 4
        %s1934 = smul.addr %s1933, 8
        %s1935 = scalar_lea.vmem %s18, %s1934
      $region104: #{famnet_pallas.1} parent=99 // pred_fallthru
        _
    $region100: #{famnet_pallas.1} parent=5 // pred_fallthru
      _
  $region6: #{famnet_pallas.1} parent=0 // loop_footer
    %s28 = sadd.s32 1, %s24
  $region7: #{famnet_pallas.1} parent=0 // loop_footer_branch
    %23 = sbr.rel target = $region3
  $region8: #{famnet_pallas.1} parent=0 // loop_exit
    _

</llo_original>
